<compile_context>
chip_gen: v5e
topology: v5e:2x2
jax: 0.10.0
libtpu: 0.0.40
codegen_flags: <defaults>
</compile_context>

<pallas_src>
import functools

import jax
import jax.numpy as jnp
from jax.experimental import pallas as pl
from jax.experimental.pallas import tpu as pltpu


# ----------------------------------------------------------------------------
# Tiling helpers
# ----------------------------------------------------------------------------
def _pick_row_tile(n):
    """dst-row tile: full array when small, else a 128-multiple that divides N."""
    if n <= 512:
        return n
    for t in (512, 256, 128):
        if n % t == 0:
            return t
    return n  # TODO(synk): pad N for ragged dst tiling; demo shapes divide evenly.


# ----------------------------------------------------------------------------
# Fused Tem_Agg_Layer kernel
# ----------------------------------------------------------------------------
def _tem_agg_kernel(feats_ref, t_row_ref, t_col_ref, adj_ref,
                    w_fc_ref, w_temp_ref, o_ref, z_sc, tz_sc, *, activation):
    """One Tem_Agg_Layer, one view (grid axis 0) / one dst-row tile (axis 1).

        z      = feats @ W_fc                       (no bias)
        tz_j   = temporal_fc(z_j) = z_j . w_temp
        e_ij   = -|t_j - t_i|
        s_ij   = exp(tz_j * e_ij / 500)             (edges only)
        alpha  = softmax_j(s_ij)
        h_i    = sum_j alpha_ij * z_j               [+ ELU between GNN layers]
    """
    # ---- once per view (first dst tile): src projection z and temporal_fc(z)
    @pl.when(pl.program_id(1) == 0)
    def _():
        z = jnp.dot(feats_ref[0], w_fc_ref[...],
                    preferred_element_type=jnp.float32)          # (N, Dout)
        z_sc[...] = z
        # (1, Dout) . (N, Dout)^T -> (1, N); the 1/500 scale is hoisted here
        # (out of the per-tile (tm, N) multiply).
        tz_sc[...] = jax.lax.dot_general(
            w_temp_ref[...], z, (((1,), (1,)), ((), ())),
            preferred_element_type=jnp.float32) * (1.0 / 500.0)

    # ---- per dst-row tile: temporal attention + aggregation
    t_src = t_row_ref[0]                        # (1, N)
    t_dst = t_col_ref[0]                        # (tm, 1)
    e = -jnp.abs(t_src - t_dst)                 # (tm, N) built in-kernel (no NxN DMA)
    s = jnp.exp(tz_sc[...] * e)                 # exp(temporal_fc(z_j) * e_ij / 500)

    adj = adj_ref[0].astype(jnp.int32)          # int8 mask widened for the compare
    # finite "-inf": all-masked rows stay finite (uniform) instead of NaN
    logits = jnp.where(adj != 0, s, -1e30)
    m = jnp.max(logits, axis=-1, keepdims=True)
    p = jnp.exp(logits - m)                     # masked entries underflow to 0
    denom = jnp.sum(p, axis=-1, keepdims=True)
    alpha = p * pl.reciprocal(denom, approx=True)

    # MXU aggregation in bf16 (f32 accumulate); softmax math stayed in f32.
    h = jnp.dot(alpha.astype(jnp.bfloat16), z_sc[...].astype(jnp.bfloat16),
                preferred_element_type=jnp.float32)
    if activation == "elu":                     # F.elu between the two GNN layers
        h = jnp.where(h > 0.0, h, jnp.exp(h) - 1.0)
    o_ref[0] = h.astype(o_ref.dtype)


def tem_agg_layer(feats, t_row, t_col, adj, w_fc_t, w_temp_row, activation):
    """Fused Tem_Agg_Layer over all views: feats (V,N,Din) -> h (V,N,Dout)."""
    V, N, Din = feats.shape
    Dout = w_fc_t.shape[1]
    tm = _pick_row_tile(N)
    kernel = functools.partial(_tem_agg_kernel, activation=activation)
    return pl.pallas_call(
        kernel,
        out_shape=jax.ShapeDtypeStruct((V, N, Dout), jnp.float32),
        grid=(V, N // tm),
        in_specs=[
            pl.BlockSpec((1, N, Din), lambda v, i: (v, 0, 0)),   # feats, resident per view
            pl.BlockSpec((1, 1, N),   lambda v, i: (v, 0, 0)),   # t (src, row layout)
            pl.BlockSpec((1, tm, 1),  lambda v, i: (v, i, 0)),   # t (dst, column layout)
            pl.BlockSpec((1, tm, N),  lambda v, i: (v, i, 0)),   # adj int8 row tile
            pl.BlockSpec((Din, Dout), lambda v, i: (0, 0)),      # W_fc (in, out)
            pl.BlockSpec((1, Dout),   lambda v, i: (0, 0)),      # temporal_fc weight
        ],
        out_specs=pl.BlockSpec((1, tm, Dout), lambda v, i: (v, i, 0)),
        scratch_shapes=[
            pltpu.VMEM((N, Dout), jnp.float32),                  # z (resident across tiles)
            pltpu.VMEM((1, N), jnp.float32),                     # temporal_fc(z) / 500
        ],
        compiler_params=pltpu.CompilerParams(
            # views shard across TensorCores (v7x megacore); dst tiles must
            # stay sequential per view because z is built into scratch at i==0.
            dimension_semantics=("parallel", "arbitrary")),
    )(feats, t_row, t_col, adj, w_fc_t, w_temp_row)


# ----------------------------------------------------------------------------
# Fused EDNN (2-layer MLP) kernel, batched over views
# ----------------------------------------------------------------------------
def _ednn_kernel(x_ref, w1_ref, b1_ref, w2_ref, b2_ref, o_ref):
    """fc2(relu(fc1(x))) — both linears fused, hidden never leaves the core."""
    h = jnp.dot(x_ref[0], w1_ref[0], preferred_element_type=jnp.float32) + b1_ref[0]
    h = jnp.maximum(h, 0.0)
    # TODO(synk): F.dropout(training=True) is stochastic; eval-mode identity here.
    o_ref[0] = (jnp.dot(h, w2_ref[0], preferred_element_type=jnp.float32)
                + b2_ref[0]).astype(o_ref.dtype)


def ednn_forward(x, w1, b1, w2, b2):
    """Per-view EDNNs in one call: x (V,N,Din) -> (V,N,Eout)."""
    V, N, Din = x.shape
    Eh, Eout = w1.shape[2], w2.shape[2]
    tm = _pick_row_tile(N)
    return pl.pallas_call(
        _ednn_kernel,
        out_shape=jax.ShapeDtypeStruct((V, N, Eout), jnp.float32),
        grid=(V, N // tm),
        in_specs=[
            pl.BlockSpec((1, tm, Din),  lambda v, i: (v, i, 0)),
            pl.BlockSpec((1, Din, Eh),  lambda v, i: (v, 0, 0)),
            pl.BlockSpec((1, 1, Eh),    lambda v, i: (v, 0, 0)),
            pl.BlockSpec((1, Eh, Eout), lambda v, i: (v, 0, 0)),
            pl.BlockSpec((1, 1, Eout),  lambda v, i: (v, 0, 0)),
        ],
        out_specs=pl.BlockSpec((1, tm, Eout), lambda v, i: (v, i, 0)),
        compiler_params=pltpu.CompilerParams(
            dimension_semantics=("parallel", "parallel")),
    )(x, w1, b1, w2, b2)


# ----------------------------------------------------------------------------
# Whole-model forward
# ----------------------------------------------------------------------------
@jax.jit
def _forward_stacked(params, feats, t_row, t_col, adj1, adj2):
    l1, l2 = params["gnn_l1"], params["gnn_l2"]
    h1 = tem_agg_layer(feats, t_row, t_col, adj1,
                       l1["W_fc_t"], l1["w_temp_row"], activation="elu")
    emb = tem_agg_layer(h1, t_row, t_col, adj2,
                        l2["W_fc_t"], l2["w_temp_row"], activation="none")
    out = ednn_forward(emb, params["ednn_W1"], params["ednn_b1"],
                       params["ednn_W2"], params["ednn_b2"])
    return out, emb


def uclsed_forward(params, blocks_dict, views):
    """UCLSED_model.forward(blocks_dict) -> (out, emb) dicts keyed by view."""
    feats = jnp.stack([blocks_dict[v][0] for v in views])     # (V, N, Din)
    t = jnp.stack([blocks_dict[v][1] for v in views])         # (V, N)
    adj1 = jnp.stack([blocks_dict[v][2][0] for v in views])   # (V, N, N) int8
    adj2 = jnp.stack([blocks_dict[v][2][1] for v in views])   # (V, N, N) int8
    out_s, emb_s = _forward_stacked(params, feats,
                                    t[:, None, :], t[:, :, None], adj1, adj2)
    out = {v: out_s[i] for i, v in enumerate(views)}
    emb = {v: emb_s[i] for i, v in enumerate(views)}
    return out, emb


# ----------------------------------------------------------------------------
# Deterministic parameter / input construction
# ----------------------------------------------------------------------------
def _xavier_normal_t(key, out_dim, in_dim, gain):
    std = gain * (2.0 / (in_dim + out_dim)) ** 0.5
    w = std * jax.random.normal(key, (out_dim, in_dim), jnp.float32)
    return w.T  # stored (in, out) so kernels compute x @ W


def _linear_default_t(key, out_dim, in_dim):
    k_w, k_b = jax.random.split(key)
    bound = 1.0 / (in_dim ** 0.5)
    w = jax.random.uniform(k_w, (out_dim, in_dim), jnp.float32, -bound, bound)
    b = jax.random.uniform(k_b, (1, out_dim), jnp.float32, -bound, bound)
    return w.T, b


def build_params(key, gnn_in, gnn_h, gnn_out, e_h, e_out, n_views):
    gain = 2.0 ** 0.5  # nn.init.calculate_gain('relu')
    keys = jax.random.split(key, 4 + 2 * n_views)
    l1 = {
        "W_fc_t": _xavier_normal_t(keys[0], gnn_h, gnn_in, gain),
        "w_temp_row": jax.random.uniform(        # nn.Linear(gnn_h, 1) weight, (1, gnn_h)
            keys[1], (1, gnn_h), jnp.float32,
            -1.0 / gnn_h ** 0.5, 1.0 / gnn_h ** 0.5),
    }
    l2 = {
        "W_fc_t": _xavier_normal_t(keys[2], gnn_out, gnn_h, gain),
        "w_temp_row": jax.random.uniform(
            keys[3], (1, gnn_out), jnp.float32,
            -1.0 / gnn_out ** 0.5, 1.0 / gnn_out ** 0.5),
    }
    w1s, b1s, w2s, b2s = [], [], [], []
    for i in range(n_views):
        w1, b1 = _linear_default_t(keys[4 + 2 * i], e_h, gnn_out)
        w2, b2 = _linear_default_t(keys[5 + 2 * i], e_out, e_h)
        w1s.append(w1); b1s.append(b1); w2s.append(w2); b2s.append(b2)
    return {
        "gnn_l1": l1, "gnn_l2": l2,
        "ednn_W1": jnp.stack(w1s), "ednn_b1": jnp.stack(b1s),
        "ednn_W2": jnp.stack(w2s), "ednn_b2": jnp.stack(b2s),
    }


def build_blocks(key, views, n_nodes, gnn_in):
    blocks = {}
    eye = jnp.eye(n_nodes, dtype=bool)
    for v in views:
        key, k_f, k_t, k_a0, k_a1 = jax.random.split(key, 5)
        feats = jax.random.normal(k_f, (n_nodes, gnn_in), jnp.float32)
        t = jax.random.uniform(k_t, (n_nodes,), jnp.float32, 0.0, 100.0)
        adjs = []
        for ka in (k_a0, k_a1):
            a = jax.random.uniform(ka, (n_nodes, n_nodes)) < 0.4
            a = jnp.logical_or(a, eye)            # self-loops: every mailbox non-empty
            adjs.append(a.astype(jnp.int8))       # int8 mask: 4x less HBM traffic
        blocks[v] = (feats, t, adjs)
    return blocks


if __name__ == "__main__":
    VIEWS = ["v0", "v1"]
    N_NODES = 16
    GNN_IN, GNN_H, GNN_OUT = 32, 32, 32
    E_H, E_OUT = 32, 8

    root = jax.random.PRNGKey(0)
    k_params, k_data = jax.random.split(root)
    params = build_params(k_params, GNN_IN, GNN_H, GNN_OUT, E_H, E_OUT, len(VIEWS))
    blocks_dict = build_blocks(k_data, VIEWS, N_NODES, GNN_IN)

    out, emb = uclsed_forward(params, blocks_dict, VIEWS)
    for v in VIEWS:
        jax.block_until_ready(out[v])
        jax.block_until_ready(emb[v])
        assert out[v].shape == (N_NODES, E_OUT)
        assert emb[v].shape == (N_NODES, GNN_OUT)
        assert bool(jnp.all(jnp.isfinite(out[v])))
        assert bool(jnp.all(jnp.isfinite(emb[v])))

    print("KERNEL_OK")
</pallas_src>

<mosaic_0001>
module attributes {stable_mosaic.version = 11 : i64} {
  func.func @_tem_agg_kernel(%arg0: i32, %arg1: i32, %arg2: memref<1x16x32xf32, #tpu.memory_space<vmem>>, %arg3: memref<1x1x16xf32, #tpu.memory_space<vmem>>, %arg4: memref<1x16x1xf32, #tpu.memory_space<vmem>>, %arg5: memref<1x16x16xi8, #tpu.memory_space<vmem>>, %arg6: memref<32x32xf32, #tpu.memory_space<vmem>>, %arg7: memref<1x32xf32, #tpu.memory_space<vmem>>, %arg8: memref<1x16x32xf32, #tpu.memory_space<vmem>>, %arg9: memref<16x32xf32, #tpu.memory_space<vmem>>, %arg10: memref<1x16xf32, #tpu.memory_space<vmem>>) attributes {dimension_semantics = [#tpu.dimension_semantics<parallel>, #tpu.dimension_semantics<arbitrary>], iteration_bounds = array<i64: 2, 1>, scalar_prefetch = 0 : i64, scratch_operands = 2 : i64, tpu.core_type = #tpu.core_type<tc>, window_params = [{transform_indices = @transform_0, window_bounds = array<i64: 1, 16, 32>}, {transform_indices = @transform_1, window_bounds = array<i64: 1, 1, 16>}, {transform_indices = @transform_2, window_bounds = array<i64: 1, 16, 1>}, {transform_indices = @transform_3, window_bounds = array<i64: 1, 16, 16>}, {pipeline_mode = #tpu.pipeline_mode<synchronous>, transform_indices = @transform_4, window_bounds = array<i64: 32, 32>}, {pipeline_mode = #tpu.pipeline_mode<synchronous>, transform_indices = @transform_5, window_bounds = array<i64: 1, 32>}, {transform_indices = @transform_6, window_bounds = array<i64: 1, 16, 32>}]} {
    %c0_i32 = arith.constant 0 : i32
    %0 = arith.cmpi eq, %arg1, %c0_i32 : i32
    %1 = arith.extui %0 : i1 to i32
    %c0_i32_0 = arith.constant 0 : i32
    %2 = arith.cmpi ne, %1, %c0_i32_0 : i32
    scf.if %2 {
      %c0_21 = arith.constant 0 : index
      %c0_22 = arith.constant 0 : index
      %c0_23 = arith.constant 0 : index
      %41 = vector.load %arg2[%c0_21, %c0_22, %c0_23] : memref<1x16x32xf32, #tpu.memory_space<vmem>>, vector<1x16x32xf32>
      %42 = vector.shape_cast %41 : vector<1x16x32xf32> to vector<16x32xf32>
      %c0_24 = arith.constant 0 : index
      %c0_25 = arith.constant 0 : index
      %43 = vector.load %arg6[%c0_24, %c0_25] : memref<32x32xf32, #tpu.memory_space<vmem>>, vector<32x32xf32>
      %cst_26 = arith.constant dense<0.000000e+00> : vector<16x32xf32>
      %44 = tpu.matmul %42, %43, %cst_26 {dimension_numbers = #tpu.dot_dimension_numbers<[1], [0], [0], [1], [0, 0, 1, 1], [], []>} : vector<16x32xf32>, vector<32x32xf32>, vector<16x32xf32> -> vector<16x32xf32>
      %c0_27 = arith.constant 0 : index
      %c0_28 = arith.constant 0 : index
      %45 = vector.load %arg9[%c0_27, %c0_28] : memref<16x32xf32, #tpu.memory_space<vmem>>, vector<16x32xf32>
      tpu.vector_store %arg9[%c0_27, %c0_28], %44 {strides = array<i32>} : memref<16x32xf32, #tpu.memory_space<vmem>>, vector<16x32xf32>,
      %c0_29 = arith.constant 0 : index
      %c0_30 = arith.constant 0 : index
      %46 = vector.load %arg7[%c0_29, %c0_30] : memref<1x32xf32, #tpu.memory_space<vmem>>, vector<1x32xf32>
      %cst_31 = arith.constant dense<0.000000e+00> : vector<1x16xf32>
      %47 = tpu.matmul %46, %44, %cst_31 {dimension_numbers = #tpu.dot_dimension_numbers<[1], [1], [0], [0], [0, 0, 1, 0], [], []>} : vector<1x32xf32>, vector<16x32xf32>, vector<1x16xf32> -> vector<1x16xf32>
      %cst_32 = arith.constant 2.000000e-03 : f32
      %48 = vector.broadcast %cst_32 : f32 to vector<1x16xf32>
      %49 = arith.mulf %47, %48 : vector<1x16xf32>
      %c0_33 = arith.constant 0 : index
      %c0_34 = arith.constant 0 : index
      %50 = vector.load %arg10[%c0_33, %c0_34] : memref<1x16xf32, #tpu.memory_space<vmem>>, vector<1x16xf32>
      tpu.vector_store %arg10[%c0_33, %c0_34], %49 {strides = array<i32>} : memref<1x16xf32, #tpu.memory_space<vmem>>, vector<1x16xf32>,
    } else {
    }
    %c0 = arith.constant 0 : index
    %c0_1 = arith.constant 0 : index
    %c0_2 = arith.constant 0 : index
    %3 = vector.load %arg3[%c0, %c0_1, %c0_2] : memref<1x1x16xf32, #tpu.memory_space<vmem>>, vector<1x1x16xf32>
    %4 = vector.shape_cast %3 : vector<1x1x16xf32> to vector<1x16xf32>
    %c0_3 = arith.constant 0 : index
    %c0_4 = arith.constant 0 : index
    %c0_5 = arith.constant 0 : index
    %5 = vector.load %arg4[%c0_3, %c0_4, %c0_5] : memref<1x16x1xf32, #tpu.memory_space<vmem>>, vector<1x16x1xf32>
    %6 = vector.shape_cast %5 : vector<1x16x1xf32> to vector<16x1xf32>
    %7 = vector.broadcast %4 : vector<1x16xf32> to vector<16x16xf32>
    %8 = vector.broadcast %6 : vector<16x1xf32> to vector<16x16xf32>
    %9 = arith.subf %7, %8 : vector<16x16xf32>
    %10 = math.absf %9 : vector<16x16xf32>
    %cst = arith.constant 0.000000e+00 : f32
    %11 = vector.broadcast %cst : f32 to vector<16x16xf32>
    %12 = arith.subf %11, %10 : vector<16x16xf32>
    %c0_6 = arith.constant 0 : index
    %c0_7 = arith.constant 0 : index
    %13 = vector.load %arg10[%c0_6, %c0_7] : memref<1x16xf32, #tpu.memory_space<vmem>>, vector<1x16xf32>
    %14 = vector.broadcast %13 : vector<1x16xf32> to vector<16x16xf32>
    %15 = arith.mulf %14, %12 : vector<16x16xf32>
    %16 = math.exp %15 : vector<16x16xf32>
    %c0_8 = arith.constant 0 : index
    %c0_9 = arith.constant 0 : index
    %c0_10 = arith.constant 0 : index
    %17 = vector.load %arg5[%c0_8, %c0_9, %c0_10] : memref<1x16x16xi8, #tpu.memory_space<vmem>>, vector<1x16x16xi8>
    %18 = vector.shape_cast %17 : vector<1x16x16xi8> to vector<16x16xi8>
    %19 = arith.extsi %18 : vector<16x16xi8> to vector<16x16xi32>
    %c0_i32_11 = arith.constant 0 : i32
    %20 = vector.broadcast %c0_i32_11 : i32 to vector<16x16xi32>
    %21 = arith.cmpi ne, %19, %20 : vector<16x16xi32>
    %cst_12 = arith.constant -1.000000e+30 : f32
    %22 = vector.broadcast %cst_12 : f32 to vector<16x16xf32>
    %23 = arith.select %21, %16, %22 : vector<16x16xi1>, vector<16x16xf32>
    %cst_13 = arith.constant dense<0xFF800000> : vector<16xf32>
    %24 = vector.multi_reduction <maximumf>, %23, %cst_13 [1] : vector<16x16xf32> to vector<16xf32>
    %25 = vector.shape_cast %24 : vector<16xf32> to vector<16x1xf32>
    %26 = vector.broadcast %25 : vector<16x1xf32> to vector<16x16xf32>
    %27 = arith.subf %23, %26 : vector<16x16xf32>
    %28 = math.exp %27 : vector<16x16xf32>
    %cst_14 = arith.constant dense<0.000000e+00> : vector<16xf32>
    %29 = vector.multi_reduction <add>, %28, %cst_14 [1] : vector<16x16xf32> to vector<16xf32>
    %30 = vector.shape_cast %29 : vector<16xf32> to vector<16x1xf32>
    %31 = tpu.reciprocal %30 {approx = true} : vector<16x1xf32> -> vector<16x1xf32>
    %32 = vector.broadcast %31 : vector<16x1xf32> to vector<16x16xf32>
    %33 = arith.mulf %28, %32 : vector<16x16xf32>
    %34 = arith.truncf %33 : vector<16x16xf32> to vector<16x16xbf16>
    %c0_15 = arith.constant 0 : index
    %c0_16 = arith.constant 0 : index
    %35 = vector.load %arg9[%c0_15, %c0_16] : memref<16x32xf32, #tpu.memory_space<vmem>>, vector<16x32xf32>
    %36 = arith.truncf %35 : vector<16x32xf32> to vector<16x32xbf16>
    %cst_17 = arith.constant dense<0.000000e+00> : vector<16x32xf32>
    %37 = tpu.matmul %34, %36, %cst_17 {dimension_numbers = #tpu.dot_dimension_numbers<[1], [0], [0], [1], [0, 0, 1, 1], [], []>} : vector<16x16xbf16>, vector<16x32xbf16>, vector<16x32xf32> -> vector<16x32xf32>
    %c0_18 = arith.constant 0 : index
    %c0_19 = arith.constant 0 : index
    %c0_20 = arith.constant 0 : index
    %38 = vector.load %arg8[%c0_18, %c0_19, %c0_20] : memref<1x16x32xf32, #tpu.memory_space<vmem>>, vector<1x16x32xf32>
    %39 = vector.shape_cast %38 : vector<1x16x32xf32> to vector<16x32xf32>
    %40 = vector.shape_cast %37 : vector<16x32xf32> to vector<1x16x32xf32>
    tpu.vector_store %arg8[%c0_18, %c0_19, %c0_20], %40 {strides = array<i32>} : memref<1x16x32xf32, #tpu.memory_space<vmem>>, vector<1x16x32xf32>,
    return
  }
  func.func @transform_0(%arg0: i32, %arg1: i32) -> (i32, i32, i32) {
    %c0_i32 = arith.constant 0 : i32
    %c0_i32_0 = arith.constant 0 : i32
    %c0_i32_1 = arith.constant 0 : i32
    return %arg0, %c0_i32, %c0_i32_0 : i32, i32, i32
  }
  func.func @transform_1(%arg0: i32, %arg1: i32) -> (i32, i32, i32) {
    %c0_i32 = arith.constant 0 : i32
    %c0_i32_0 = arith.constant 0 : i32
    %c0_i32_1 = arith.constant 0 : i32
    return %arg0, %c0_i32, %c0_i32_0 : i32, i32, i32
  }
  func.func @transform_2(%arg0: i32, %arg1: i32) -> (i32, i32, i32) {
    %c0_i32 = arith.constant 0 : i32
    %c0_i32_0 = arith.constant 0 : i32
    return %arg0, %arg1, %c0_i32 : i32, i32, i32
  }
  func.func @transform_3(%arg0: i32, %arg1: i32) -> (i32, i32, i32) {
    %c0_i32 = arith.constant 0 : i32
    %c0_i32_0 = arith.constant 0 : i32
    return %arg0, %arg1, %c0_i32 : i32, i32, i32
  }
  func.func @transform_4(%arg0: i32, %arg1: i32) -> (i32, i32) {
    %c0_i32 = arith.constant 0 : i32
    %c0_i32_0 = arith.constant 0 : i32
    %c0_i32_1 = arith.constant 0 : i32
    return %c0_i32, %c0_i32_0 : i32, i32
  }
  func.func @transform_5(%arg0: i32, %arg1: i32) -> (i32, i32) {
    %c0_i32 = arith.constant 0 : i32
    %c0_i32_0 = arith.constant 0 : i32
    %c0_i32_1 = arith.constant 0 : i32
    return %c0_i32, %c0_i32_0 : i32, i32
  }
  func.func @transform_6(%arg0: i32, %arg1: i32) -> (i32, i32, i32) {
    %c0_i32 = arith.constant 0 : i32
    %c0_i32_0 = arith.constant 0 : i32
    return %arg0, %arg1, %c0_i32 : i32, i32, i32
  }
}

module attributes {stable_mosaic.version = 11 : i64} {
  func.func @_tem_agg_kernel(%arg0: i32, %arg1: i32, %arg2: memref<1x16x32xf32, #tpu.memory_space<vmem>>, %arg3: memref<1x1x16xf32, #tpu.memory_space<vmem>>, %arg4: memref<1x16x1xf32, #tpu.memory_space<vmem>>, %arg5: memref<1x16x16xi8, #tpu.memory_space<vmem>>, %arg6: memref<32x32xf32, #tpu.memory_space<vmem>>, %arg7: memref<1x32xf32, #tpu.memory_space<vmem>>, %arg8: memref<1x16x32xf32, #tpu.memory_space<vmem>>, %arg9: memref<16x32xf32, #tpu.memory_space<vmem>>, %arg10: memref<1x16xf32, #tpu.memory_space<vmem>>) attributes {dimension_semantics = [#tpu.dimension_semantics<parallel>, #tpu.dimension_semantics<arbitrary>], iteration_bounds = array<i64: 2, 1>, scalar_prefetch = 0 : i64, scratch_operands = 2 : i64, tpu.core_type = #tpu.core_type<tc>, window_params = [{transform_indices = @transform_0, window_bounds = array<i64: 1, 16, 32>}, {transform_indices = @transform_1, window_bounds = array<i64: 1, 1, 16>}, {transform_indices = @transform_2, window_bounds = array<i64: 1, 16, 1>}, {transform_indices = @transform_3, window_bounds = array<i64: 1, 16, 16>}, {pipeline_mode = #tpu.pipeline_mode<synchronous>, transform_indices = @transform_4, window_bounds = array<i64: 32, 32>}, {pipeline_mode = #tpu.pipeline_mode<synchronous>, transform_indices = @transform_5, window_bounds = array<i64: 1, 32>}, {transform_indices = @transform_6, window_bounds = array<i64: 1, 16, 32>}]} {
    %c0_i32 = arith.constant 0 : i32
    %0 = arith.cmpi eq, %arg1, %c0_i32 : i32
    %1 = arith.extui %0 : i1 to i32
    %c0_i32_0 = arith.constant 0 : i32
    %2 = arith.cmpi ne, %1, %c0_i32_0 : i32
    scf.if %2 {
      %c0_23 = arith.constant 0 : index
      %c0_24 = arith.constant 0 : index
      %c0_25 = arith.constant 0 : index
      %47 = vector.load %arg2[%c0_23, %c0_24, %c0_25] : memref<1x16x32xf32, #tpu.memory_space<vmem>>, vector<1x16x32xf32>
      %48 = vector.shape_cast %47 : vector<1x16x32xf32> to vector<16x32xf32>
      %c0_26 = arith.constant 0 : index
      %c0_27 = arith.constant 0 : index
      %49 = vector.load %arg6[%c0_26, %c0_27] : memref<32x32xf32, #tpu.memory_space<vmem>>, vector<32x32xf32>
      %cst_28 = arith.constant dense<0.000000e+00> : vector<16x32xf32>
      %50 = tpu.matmul %48, %49, %cst_28 {dimension_numbers = #tpu.dot_dimension_numbers<[1], [0], [0], [1], [0, 0, 1, 1], [], []>} : vector<16x32xf32>, vector<32x32xf32>, vector<16x32xf32> -> vector<16x32xf32>
      %c0_29 = arith.constant 0 : index
      %c0_30 = arith.constant 0 : index
      %51 = vector.load %arg9[%c0_29, %c0_30] : memref<16x32xf32, #tpu.memory_space<vmem>>, vector<16x32xf32>
      tpu.vector_store %arg9[%c0_29, %c0_30], %50 {strides = array<i32>} : memref<16x32xf32, #tpu.memory_space<vmem>>, vector<16x32xf32>,
      %c0_31 = arith.constant 0 : index
      %c0_32 = arith.constant 0 : index
      %52 = vector.load %arg7[%c0_31, %c0_32] : memref<1x32xf32, #tpu.memory_space<vmem>>, vector<1x32xf32>
      %cst_33 = arith.constant dense<0.000000e+00> : vector<1x16xf32>
      %53 = tpu.matmul %52, %50, %cst_33 {dimension_numbers = #tpu.dot_dimension_numbers<[1], [1], [0], [0], [0, 0, 1, 0], [], []>} : vector<1x32xf32>, vector<16x32xf32>, vector<1x16xf32> -> vector<1x16xf32>
      %cst_34 = arith.constant 2.000000e-03 : f32
      %54 = vector.broadcast %cst_34 : f32 to vector<1x16xf32>
      %55 = arith.mulf %53, %54 : vector<1x16xf32>
      %c0_35 = arith.constant 0 : index
      %c0_36 = arith.constant 0 : index
      %56 = vector.load %arg10[%c0_35, %c0_36] : memref<1x16xf32, #tpu.memory_space<vmem>>, vector<1x16xf32>
      tpu.vector_store %arg10[%c0_35, %c0_36], %55 {strides = array<i32>} : memref<1x16xf32, #tpu.memory_space<vmem>>, vector<1x16xf32>,
    } else {
    }
    %c0 = arith.constant 0 : index
    %c0_1 = arith.constant 0 : index
    %c0_2 = arith.constant 0 : index
    %3 = vector.load %arg3[%c0, %c0_1, %c0_2] : memref<1x1x16xf32, #tpu.memory_space<vmem>>, vector<1x1x16xf32>
    %4 = vector.shape_cast %3 : vector<1x1x16xf32> to vector<1x16xf32>
    %c0_3 = arith.constant 0 : index
    %c0_4 = arith.constant 0 : index
    %c0_5 = arith.constant 0 : index
    %5 = vector.load %arg4[%c0_3, %c0_4, %c0_5] : memref<1x16x1xf32, #tpu.memory_space<vmem>>, vector<1x16x1xf32>
    %6 = vector.shape_cast %5 : vector<1x16x1xf32> to vector<16x1xf32>
    %7 = vector.broadcast %4 : vector<1x16xf32> to vector<16x16xf32>
    %8 = vector.broadcast %6 : vector<16x1xf32> to vector<16x16xf32>
    %9 = arith.subf %7, %8 : vector<16x16xf32>
    %10 = math.absf %9 : vector<16x16xf32>
    %cst = arith.constant 0.000000e+00 : f32
    %11 = vector.broadcast %cst : f32 to vector<16x16xf32>
    %12 = arith.subf %11, %10 : vector<16x16xf32>
    %c0_6 = arith.constant 0 : index
    %c0_7 = arith.constant 0 : index
    %13 = vector.load %arg10[%c0_6, %c0_7] : memref<1x16xf32, #tpu.memory_space<vmem>>, vector<1x16xf32>
    %14 = vector.broadcast %13 : vector<1x16xf32> to vector<16x16xf32>
    %15 = arith.mulf %14, %12 : vector<16x16xf32>
    %16 = math.exp %15 : vector<16x16xf32>
    %c0_8 = arith.constant 0 : index
    %c0_9 = arith.constant 0 : index
    %c0_10 = arith.constant 0 : index
    %17 = vector.load %arg5[%c0_8, %c0_9, %c0_10] : memref<1x16x16xi8, #tpu.memory_space<vmem>>, vector<1x16x16xi8>
    %18 = vector.shape_cast %17 : vector<1x16x16xi8> to vector<16x16xi8>
    %19 = arith.extsi %18 : vector<16x16xi8> to vector<16x16xi32>
    %c0_i32_11 = arith.constant 0 : i32
    %20 = vector.broadcast %c0_i32_11 : i32 to vector<16x16xi32>
    %21 = arith.cmpi ne, %19, %20 : vector<16x16xi32>
    %cst_12 = arith.constant -1.000000e+30 : f32
    %22 = vector.broadcast %cst_12 : f32 to vector<16x16xf32>
    %23 = arith.select %21, %16, %22 : vector<16x16xi1>, vector<16x16xf32>
    %cst_13 = arith.constant dense<0xFF800000> : vector<16xf32>
    %24 = vector.multi_reduction <maximumf>, %23, %cst_13 [1] : vector<16x16xf32> to vector<16xf32>
    %25 = vector.shape_cast %24 : vector<16xf32> to vector<16x1xf32>
    %26 = vector.broadcast %25 : vector<16x1xf32> to vector<16x16xf32>
    %27 = arith.subf %23, %26 : vector<16x16xf32>
    %28 = math.exp %27 : vector<16x16xf32>
    %cst_14 = arith.constant dense<0.000000e+00> : vector<16xf32>
    %29 = vector.multi_reduction <add>, %28, %cst_14 [1] : vector<16x16xf32> to vector<16xf32>
    %30 = vector.shape_cast %29 : vector<16xf32> to vector<16x1xf32>
    %31 = tpu.reciprocal %30 {approx = true} : vector<16x1xf32> -> vector<16x1xf32>
    %32 = vector.broadcast %31 : vector<16x1xf32> to vector<16x16xf32>
    %33 = arith.mulf %28, %32 : vector<16x16xf32>
    %34 = arith.truncf %33 : vector<16x16xf32> to vector<16x16xbf16>
    %c0_15 = arith.constant 0 : index
    %c0_16 = arith.constant 0 : index
    %35 = vector.load %arg9[%c0_15, %c0_16] : memref<16x32xf32, #tpu.memory_space<vmem>>, vector<16x32xf32>
    %36 = arith.truncf %35 : vector<16x32xf32> to vector<16x32xbf16>
    %cst_17 = arith.constant dense<0.000000e+00> : vector<16x32xf32>
    %37 = tpu.matmul %34, %36, %cst_17 {dimension_numbers = #tpu.dot_dimension_numbers<[1], [0], [0], [1], [0, 0, 1, 1], [], []>} : vector<16x16xbf16>, vector<16x32xbf16>, vector<16x32xf32> -> vector<16x32xf32>
    %cst_18 = arith.constant 0.000000e+00 : f32
    %38 = vector.broadcast %cst_18 : f32 to vector<16x32xf32>
    %39 = arith.cmpf ogt, %37, %38 : vector<16x32xf32>
    %40 = math.exp %37 : vector<16x32xf32>
    %cst_19 = arith.constant 1.000000e+00 : f32
    %41 = vector.broadcast %cst_19 : f32 to vector<16x32xf32>
    %42 = arith.subf %40, %41 : vector<16x32xf32>
    %43 = arith.select %39, %37, %42 : vector<16x32xi1>, vector<16x32xf32>
    %c0_20 = arith.constant 0 : index
    %c0_21 = arith.constant 0 : index
    %c0_22 = arith.constant 0 : index
    %44 = vector.load %arg8[%c0_20, %c0_21, %c0_22] : memref<1x16x32xf32, #tpu.memory_space<vmem>>, vector<1x16x32xf32>
    %45 = vector.shape_cast %44 : vector<1x16x32xf32> to vector<16x32xf32>
    %46 = vector.shape_cast %43 : vector<16x32xf32> to vector<1x16x32xf32>
    tpu.vector_store %arg8[%c0_20, %c0_21, %c0_22], %46 {strides = array<i32>} : memref<1x16x32xf32, #tpu.memory_space<vmem>>, vector<1x16x32xf32>,
    return
  }
  func.func @transform_0(%arg0: i32, %arg1: i32) -> (i32, i32, i32) {
    %c0_i32 = arith.constant 0 : i32
    %c0_i32_0 = arith.constant 0 : i32
    %c0_i32_1 = arith.constant 0 : i32
    return %arg0, %c0_i32, %c0_i32_0 : i32, i32, i32
  }
  func.func @transform_1(%arg0: i32, %arg1: i32) -> (i32, i32, i32) {
    %c0_i32 = arith.constant 0 : i32
    %c0_i32_0 = arith.constant 0 : i32
    %c0_i32_1 = arith.constant 0 : i32
    return %arg0, %c0_i32, %c0_i32_0 : i32, i32, i32
  }
  func.func @transform_2(%arg0: i32, %arg1: i32) -> (i32, i32, i32) {
    %c0_i32 = arith.constant 0 : i32
    %c0_i32_0 = arith.constant 0 : i32
    return %arg0, %arg1, %c0_i32 : i32, i32, i32
  }
  func.func @transform_3(%arg0: i32, %arg1: i32) -> (i32, i32, i32) {
    %c0_i32 = arith.constant 0 : i32
    %c0_i32_0 = arith.constant 0 : i32
    return %arg0, %arg1, %c0_i32 : i32, i32, i32
  }
  func.func @transform_4(%arg0: i32, %arg1: i32) -> (i32, i32) {
    %c0_i32 = arith.constant 0 : i32
    %c0_i32_0 = arith.constant 0 : i32
    %c0_i32_1 = arith.constant 0 : i32
    return %c0_i32, %c0_i32_0 : i32, i32
  }
  func.func @transform_5(%arg0: i32, %arg1: i32) -> (i32, i32) {
    %c0_i32 = arith.constant 0 : i32
    %c0_i32_0 = arith.constant 0 : i32
    %c0_i32_1 = arith.constant 0 : i32
    return %c0_i32, %c0_i32_0 : i32, i32
  }
  func.func @transform_6(%arg0: i32, %arg1: i32) -> (i32, i32, i32) {
    %c0_i32 = arith.constant 0 : i32
    %c0_i32_0 = arith.constant 0 : i32
    return %arg0, %arg1, %c0_i32 : i32, i32, i32
  }
}

module attributes {stable_mosaic.version = 11 : i64} {
  func.func @_ednn_kernel(%arg0: i32, %arg1: i32, %arg2: memref<1x16x32xf32, #tpu.memory_space<vmem>>, %arg3: memref<1x32x32xf32, #tpu.memory_space<vmem>>, %arg4: memref<1x1x32xf32, #tpu.memory_space<vmem>>, %arg5: memref<1x32x8xf32, #tpu.memory_space<vmem>>, %arg6: memref<1x1x8xf32, #tpu.memory_space<vmem>>, %arg7: memref<1x16x8xf32, #tpu.memory_space<vmem>>) attributes {dimension_semantics = [#tpu.dimension_semantics<parallel>, #tpu.dimension_semantics<parallel>], iteration_bounds = array<i64: 2, 1>, scalar_prefetch = 0 : i64, scratch_operands = 0 : i64, tpu.core_type = #tpu.core_type<tc>, window_params = [{transform_indices = @transform_0, window_bounds = array<i64: 1, 16, 32>}, {transform_indices = @transform_1, window_bounds = array<i64: 1, 32, 32>}, {transform_indices = @transform_2, window_bounds = array<i64: 1, 1, 32>}, {transform_indices = @transform_3, window_bounds = array<i64: 1, 32, 8>}, {transform_indices = @transform_4, window_bounds = array<i64: 1, 1, 8>}, {transform_indices = @transform_5, window_bounds = array<i64: 1, 16, 8>}]} {
    %c0 = arith.constant 0 : index
    %c0_0 = arith.constant 0 : index
    %c0_1 = arith.constant 0 : index
    %0 = vector.load %arg2[%c0, %c0_0, %c0_1] : memref<1x16x32xf32, #tpu.memory_space<vmem>>, vector<1x16x32xf32>
    %1 = vector.shape_cast %0 : vector<1x16x32xf32> to vector<16x32xf32>
    %c0_2 = arith.constant 0 : index
    %c0_3 = arith.constant 0 : index
    %c0_4 = arith.constant 0 : index
    %2 = vector.load %arg3[%c0_2, %c0_3, %c0_4] : memref<1x32x32xf32, #tpu.memory_space<vmem>>, vector<1x32x32xf32>
    %3 = vector.shape_cast %2 : vector<1x32x32xf32> to vector<32x32xf32>
    %cst = arith.constant dense<0.000000e+00> : vector<16x32xf32>
    %4 = tpu.matmul %1, %3, %cst {dimension_numbers = #tpu.dot_dimension_numbers<[1], [0], [0], [1], [0, 0, 1, 1], [], []>} : vector<16x32xf32>, vector<32x32xf32>, vector<16x32xf32> -> vector<16x32xf32>
    %c0_5 = arith.constant 0 : index
    %c0_6 = arith.constant 0 : index
    %c0_7 = arith.constant 0 : index
    %5 = vector.load %arg4[%c0_5, %c0_6, %c0_7] : memref<1x1x32xf32, #tpu.memory_space<vmem>>, vector<1x1x32xf32>
    %6 = vector.shape_cast %5 : vector<1x1x32xf32> to vector<1x32xf32>
    %7 = vector.broadcast %6 : vector<1x32xf32> to vector<16x32xf32>
    %8 = arith.addf %4, %7 : vector<16x32xf32>
    %cst_8 = arith.constant 0.000000e+00 : f32
    %9 = vector.broadcast %cst_8 : f32 to vector<16x32xf32>
    %10 = arith.maximumf %8, %9 : vector<16x32xf32>
    %c0_9 = arith.constant 0 : index
    %c0_10 = arith.constant 0 : index
    %c0_11 = arith.constant 0 : index
    %11 = vector.load %arg5[%c0_9, %c0_10, %c0_11] : memref<1x32x8xf32, #tpu.memory_space<vmem>>, vector<1x32x8xf32>
    %12 = vector.shape_cast %11 : vector<1x32x8xf32> to vector<32x8xf32>
    %cst_12 = arith.constant dense<0.000000e+00> : vector<16x8xf32>
    %13 = tpu.matmul %10, %12, %cst_12 {dimension_numbers = #tpu.dot_dimension_numbers<[1], [0], [0], [1], [0, 0, 1, 1], [], []>} : vector<16x32xf32>, vector<32x8xf32>, vector<16x8xf32> -> vector<16x8xf32>
    %c0_13 = arith.constant 0 : index
    %c0_14 = arith.constant 0 : index
    %c0_15 = arith.constant 0 : index
    %14 = vector.load %arg6[%c0_13, %c0_14, %c0_15] : memref<1x1x8xf32, #tpu.memory_space<vmem>>, vector<1x1x8xf32>
    %15 = vector.shape_cast %14 : vector<1x1x8xf32> to vector<1x8xf32>
    %16 = vector.broadcast %15 : vector<1x8xf32> to vector<16x8xf32>
    %17 = arith.addf %13, %16 : vector<16x8xf32>
    %c0_16 = arith.constant 0 : index
    %c0_17 = arith.constant 0 : index
    %c0_18 = arith.constant 0 : index
    %18 = vector.load %arg7[%c0_16, %c0_17, %c0_18] : memref<1x16x8xf32, #tpu.memory_space<vmem>>, vector<1x16x8xf32>
    %19 = vector.shape_cast %18 : vector<1x16x8xf32> to vector<16x8xf32>
    %20 = vector.shape_cast %17 : vector<16x8xf32> to vector<1x16x8xf32>
    tpu.vector_store %arg7[%c0_16, %c0_17, %c0_18], %20 {strides = array<i32>} : memref<1x16x8xf32, #tpu.memory_space<vmem>>, vector<1x16x8xf32>,
    return
  }
  func.func @transform_0(%arg0: i32, %arg1: i32) -> (i32, i32, i32) {
    %c0_i32 = arith.constant 0 : i32
    %c0_i32_0 = arith.constant 0 : i32
    return %arg0, %arg1, %c0_i32 : i32, i32, i32
  }
  func.func @transform_1(%arg0: i32, %arg1: i32) -> (i32, i32, i32) {
    %c0_i32 = arith.constant 0 : i32
    %c0_i32_0 = arith.constant 0 : i32
    %c0_i32_1 = arith.constant 0 : i32
    return %arg0, %c0_i32, %c0_i32_0 : i32, i32, i32
  }
  func.func @transform_2(%arg0: i32, %arg1: i32) -> (i32, i32, i32) {
    %c0_i32 = arith.constant 0 : i32
    %c0_i32_0 = arith.constant 0 : i32
    %c0_i32_1 = arith.constant 0 : i32
    return %arg0, %c0_i32, %c0_i32_0 : i32, i32, i32
  }
  func.func @transform_3(%arg0: i32, %arg1: i32) -> (i32, i32, i32) {
    %c0_i32 = arith.constant 0 : i32
    %c0_i32_0 = arith.constant 0 : i32
    %c0_i32_1 = arith.constant 0 : i32
    return %arg0, %c0_i32, %c0_i32_0 : i32, i32, i32
  }
  func.func @transform_4(%arg0: i32, %arg1: i32) -> (i32, i32, i32) {
    %c0_i32 = arith.constant 0 : i32
    %c0_i32_0 = arith.constant 0 : i32
    %c0_i32_1 = arith.constant 0 : i32
    return %arg0, %c0_i32, %c0_i32_0 : i32, i32, i32
  }
  func.func @transform_5(%arg0: i32, %arg1: i32) -> (i32, i32, i32) {
    %c0_i32 = arith.constant 0 : i32
    %c0_i32_0 = arith.constant 0 : i32
    return %arg0, %arg1, %c0_i32 : i32, i32, i32
  }
}

</mosaic_0001>

<llo_original>
// kernel: _forward_stacked.4
$region0: #{_forward_stacked.4}
  #allocation0 [shape = 'u32[]', space=smem, size = 0x4, offset = 0x4, fixed_abs, tag = 'smem constant byte address 0x4 - core index']
  #allocation1 [shape = 'u32[72,128]{1,0:T(1,128)}', space=vmem, size = 0x9000, scoped, tag = 'internal scratch']
  #allocation2 [shape = 'f32[16,32]{1,0:T(8,128)}', space=vmem, size = 0x2000, scoped, tag = 'scratch operand']
  #allocation3 [shape = 'f32[1,16]{1,0:T(1,128)}', space=vmem, size = 0x200, scoped, tag = 'scratch operand']
  %s0 = inlined_call_operand.vmem [shape: f32[2,16,32], index: 0, kind: input, shape index: {}]
  %s1 = inlined_call_operand.vmem [shape: f32[2,1,16], index: 1, kind: input, shape index: {}]
  %s2 = inlined_call_operand.vmem [shape: f32[2,16,1], index: 2, kind: input, shape index: {}]
  %s3 = inlined_call_operand.vmem [shape: s8[2,16,16], index: 3, kind: input, shape index: {}]
  %s4 = inlined_call_operand.hbm [shape: f32[32,32], index: 4, kind: input, shape index: {}]
  %s5 = inlined_call_operand.vmem [shape: f32[1,32], index: 5, kind: input, shape index: {}]
  %s6 = inlined_call_operand.vmem [shape: f32[2,16,32], index: 6, kind: output, shape index: {}]
  %s7 = sld [smem:[#allocation0]]
  $region65: #{_forward_stacked.4} parent=0
    _
  %s9 = ssub.s32 1, %s7
  %s10 = scalar_select 0, %s9, %s7
  $region1: #{_forward_stacked.4} parent=0
    #allocation4 [shape = 'u8[16384]{0}', space=vmem, size = 0x4000, scoped, tag = 'input window, operand 4, single buffered']
    #allocation5 [shape = 's32[2]{0}', space=sflag, size = 0x8, scoped, tag = 'scoped memory for _forward_stacked.4']
    %11 = vsyncpa [#allocation5], 0
    loop: start=0, step=1, limit=4
    $region2: #{_forward_stacked.4} parent=1 // loop_pre_header
      _
    $region3: #{_forward_stacked.4} parent=1 // loop_header
      %s13 = sphi 0, %s17
      %p14 = scmp.ge.s32.totalorder %s13, 4
      %s20 = sphi 0, %s32
      %s21 = sphi 0, %s28
      %s22 = sphi 0, %s20
      %s23 = sphi 0, %s21
      %s24 = sphi 0, %s22
      %s25 = sphi 0, %s23
      %s35 = sphi 0, %s37
      %s38 = sphi 0, %s35
      %s39 = sphi 0, %s38
      %s55 = sphi 0, %s39
      %s61 = sphi 0, %s63
      %s64 = sphi 0, %s61
      %s65 = sphi 0, %s64
      %s81 = sphi 0, %s65
      %s89 = sphi 0, %s91
      %s92 = sphi 0, %s89
      %s93 = sphi 0, %s92
      %s109 = sphi 0, %s93
      %s117 = sphi 0, %s119
      %s120 = sphi 0, %s117
      %s121 = sphi 0, %s120
      %s137 = sphi 0, %s121
      %s141 = sphi 0, %s141
      %s143 = sphi 0, %s141
      %s144 = sphi 0, %s143
      %s158 = sphi 0, %s144
      %s162 = sphi 0, %s162
      %s164 = sphi 0, %s162
      %s165 = sphi 0, %s164
      %s179 = sphi 0, %s165
      %s187 = sphi 0, %s189
      %s190 = sphi 0, %s187
      %s191 = sphi 0, %s190
      %s207 = sphi 0, %s191
    $region4: #{_forward_stacked.4} parent=1 // loop_header_branch
      %16 = sbr.rel (%p14) target = $region8
    $region5: #{_forward_stacked.4} parent=1 // loop_body
      %s18 = ssub.s32 %s13, 1
      %s19 = ssub.s32 %s13, 2
      %s26 = sadd.s32 1, %s21
      %p27 = scmp.ge.s32.totalorder %s26, 1
      %s28 = scalar_select %p27, 0, %s26
      %s29 = sadd.s32 1, %s20
      %s30 = scalar_select %p27, %s29, %s20
      %p31 = scmp.ge.s32.totalorder %s30, 2
      %s32 = scalar_select %p31, 0, %s30
      %s33 = ssub.s32 %s20, %s32
      %p34 = scmp.eq.s32.totalorder %s33, 0
      %s36 = sadd.s32 %s35, 1
      %s37 = scalar_select %p34, %s35, %s36
      %p40 = pneg %p34
      %p41 = scmp.eq.s32.totalorder %s13, 1
      %p42 = por %p40, %p41
      %p43 = scmp.ne.s32.totalorder %s35, %s38
      %p44 = scmp.eq.s32.totalorder %s13, 0
      %p45 = por %p43, %p44
      %p46 = scmp.ne.s32.totalorder %s35, %s38
      %p47 = scmp.eq.s32.totalorder %s18, 1
      %p48 = por %p46, %p47
      %p49 = scmp.ne.s32.totalorder %s38, %s39
      %p50 = scmp.eq.s32.totalorder %s18, 0
      %p51 = por %p49, %p50
      %p52 = scmp.ne.s32.totalorder %s38, %s39
      %p53 = scmp.eq.s32.totalorder %s19, 1
      %p54 = por %p52, %p53
      %p56 = scmp.ne.s32.totalorder %s39, %s55
      %p57 = scmp.eq.s32.totalorder %s19, 0
      %p58 = por %p56, %p57
      %s59 = ssub.s32 %s20, %s32
      %p60 = scmp.eq.s32.totalorder %s59, 0
      %s62 = sadd.s32 %s61, 1
      %s63 = scalar_select %p60, %s61, %s62
      %p66 = pneg %p60
      %p67 = scmp.eq.s32.totalorder %s13, 1
      %p68 = por %p66, %p67
      %p69 = scmp.ne.s32.totalorder %s61, %s64
      %p70 = scmp.eq.s32.totalorder %s13, 0
      %p71 = por %p69, %p70
      %p72 = scmp.ne.s32.totalorder %s61, %s64
      %p73 = scmp.eq.s32.totalorder %s18, 1
      %p74 = por %p72, %p73
      %p75 = scmp.ne.s32.totalorder %s64, %s65
      %p76 = scmp.eq.s32.totalorder %s18, 0
      %p77 = por %p75, %p76
      %p78 = scmp.ne.s32.totalorder %s64, %s65
      %p79 = scmp.eq.s32.totalorder %s19, 1
      %p80 = por %p78, %p79
      %p82 = scmp.ne.s32.totalorder %s65, %s81
      %p83 = scmp.eq.s32.totalorder %s19, 0
      %p84 = por %p82, %p83
      %s85 = ssub.s32 %s20, %s32
      %s86 = ssub.s32 %s21, %s28
      %s87 = sor.u32 %s85, %s86
      %p88 = scmp.eq.s32.totalorder %s87, 0
      %s90 = sadd.s32 %s89, 1
      %s91 = scalar_select %p88, %s89, %s90
      %p94 = pneg %p88
      %p95 = scmp.eq.s32.totalorder %s13, 1
      %p96 = por %p94, %p95
      %p97 = scmp.ne.s32.totalorder %s89, %s92
      %p98 = scmp.eq.s32.totalorder %s13, 0
      %p99 = por %p97, %p98
      %p100 = scmp.ne.s32.totalorder %s89, %s92
      %p101 = scmp.eq.s32.totalorder %s18, 1
      %p102 = por %p100, %p101
      %p103 = scmp.ne.s32.totalorder %s92, %s93
      %p104 = scmp.eq.s32.totalorder %s18, 0
      %p105 = por %p103, %p104
      %p106 = scmp.ne.s32.totalorder %s92, %s93
      %p107 = scmp.eq.s32.totalorder %s19, 1
      %p108 = por %p106, %p107
      %p110 = scmp.ne.s32.totalorder %s93, %s109
      %p111 = scmp.eq.s32.totalorder %s19, 0
      %p112 = por %p110, %p111
      %s113 = ssub.s32 %s20, %s32
      %s114 = ssub.s32 %s21, %s28
      %s115 = sor.u32 %s113, %s114
      %p116 = scmp.eq.s32.totalorder %s115, 0
      %s118 = sadd.s32 %s117, 1
      %s119 = scalar_select %p116, %s117, %s118
      %p122 = pneg %p116
      %p123 = scmp.eq.s32.totalorder %s13, 1
      %p124 = por %p122, %p123
      %p125 = scmp.ne.s32.totalorder %s117, %s120
      %p126 = scmp.eq.s32.totalorder %s13, 0
      %p127 = por %p125, %p126
      %p128 = scmp.ne.s32.totalorder %s117, %s120
      %p129 = scmp.eq.s32.totalorder %s18, 1
      %p130 = por %p128, %p129
      %p131 = scmp.ne.s32.totalorder %s120, %s121
      %p132 = scmp.eq.s32.totalorder %s18, 0
      %p133 = por %p131, %p132
      %p134 = scmp.ne.s32.totalorder %s120, %s121
      %p135 = scmp.eq.s32.totalorder %s19, 1
      %p136 = por %p134, %p135
      %p138 = scmp.ne.s32.totalorder %s121, %s137
      %p139 = scmp.eq.s32.totalorder %s19, 0
      %p140 = por %p138, %p139
      %s142 = sadd.s32 %s141, 1
      %p145 = scmp.eq.s32.totalorder %s13, 1
      %p146 = scmp.ne.s32.totalorder %s141, %s143
      %p147 = scmp.eq.s32.totalorder %s13, 0
      %p148 = por %p146, %p147
      %p149 = scmp.ne.s32.totalorder %s141, %s143
      %p150 = scmp.eq.s32.totalorder %s18, 1
      %p151 = por %p149, %p150
      %p152 = scmp.ne.s32.totalorder %s143, %s144
      %p153 = scmp.eq.s32.totalorder %s18, 0
      %p154 = por %p152, %p153
      %p155 = scmp.ne.s32.totalorder %s143, %s144
      %p156 = scmp.eq.s32.totalorder %s19, 1
      %p157 = por %p155, %p156
      %p159 = scmp.ne.s32.totalorder %s144, %s158
      %p160 = scmp.eq.s32.totalorder %s19, 0
      %p161 = por %p159, %p160
      %s163 = sadd.s32 %s162, 1
      %p166 = scmp.eq.s32.totalorder %s13, 1
      %p167 = scmp.ne.s32.totalorder %s162, %s164
      %p168 = scmp.eq.s32.totalorder %s13, 0
      %p169 = por %p167, %p168
      %p170 = scmp.ne.s32.totalorder %s162, %s164
      %p171 = scmp.eq.s32.totalorder %s18, 1
      %p172 = por %p170, %p171
      %p173 = scmp.ne.s32.totalorder %s164, %s165
      %p174 = scmp.eq.s32.totalorder %s18, 0
      %p175 = por %p173, %p174
      %p176 = scmp.ne.s32.totalorder %s164, %s165
      %p177 = scmp.eq.s32.totalorder %s19, 1
      %p178 = por %p176, %p177
      %p180 = scmp.ne.s32.totalorder %s165, %s179
      %p181 = scmp.eq.s32.totalorder %s19, 0
      %p182 = por %p180, %p181
      %s183 = ssub.s32 %s20, %s32
      %s184 = ssub.s32 %s21, %s28
      %s185 = sor.u32 %s183, %s184
      %p186 = scmp.eq.s32.totalorder %s185, 0
      %s188 = sadd.s32 %s187, 1
      %s189 = scalar_select %p186, %s187, %s188
      %p192 = pneg %p186
      %p193 = scmp.eq.s32.totalorder %s13, 1
      %p194 = por %p192, %p193
      %p195 = scmp.ne.s32.totalorder %s187, %s190
      %p196 = scmp.eq.s32.totalorder %s13, 0
      %p197 = por %p195, %p196
      %p198 = scmp.ne.s32.totalorder %s187, %s190
      %p199 = scmp.eq.s32.totalorder %s18, 1
      %p200 = por %p198, %p199
      %p201 = scmp.ne.s32.totalorder %s190, %s191
      %p202 = scmp.eq.s32.totalorder %s18, 0
      %p203 = por %p201, %p202
      %p204 = scmp.ne.s32.totalorder %s190, %s191
      %p205 = scmp.eq.s32.totalorder %s19, 1
      %p206 = por %p204, %p205
      %p208 = scmp.ne.s32.totalorder %s191, %s207
      %p209 = scmp.eq.s32.totalorder %s19, 0
      %p210 = por %p208, %p209
      %p211 = scmp.le.s32.totalorder 1, %s13
      %p212 = scmp.lt.s32.totalorder %s13, 3
      %p213 = pnand %p211, %p212
      %p214 = pneg %p213
      // Predicated region
      $region9: #{_forward_stacked.4} parent=5 // pred_check
        _
      $region10: #{_forward_stacked.4} parent=5 // pred_check_branch
        %216 = sbr.rel (%p213) target = $region12
      $region11: #{_forward_stacked.4} parent=5 // pred_region
        %s217 = ssub.s32 %s13, 1
        // Predicated region
        $region13: #{_forward_stacked.4} parent=11 // pred_check
          %p218 = pneg %p154
        $region14: #{_forward_stacked.4} parent=11 // pred_check_branch
          %220 = sbr.rel (%p218) target = $region16
        $region15: #{_forward_stacked.4} parent=11 // pred_region
          %222 = vsyncadd [#allocation5], 0
          %s223 = sshll.u32 %s4, 4
          %s224 = int_to_ptr.hbm [resolvable:$true] %s223
          %s225 = sshll.u32 [#allocation4], 4
          %s226 = int_to_ptr.vmem [resolvable:$true] %s225
          %231 = dma.hbm_to_vmem [thread:$0]  %s224, 512, %s226, [#allocation5], 128, 128, 8
        $region16: #{_forward_stacked.4} parent=11 // pred_fallthru
          _
        // Predicated region
        $region17: #{_forward_stacked.4} parent=11 // pred_check
          %p232 = pneg %p175
        $region18: #{_forward_stacked.4} parent=11 // pred_check_branch
          %234 = sbr.rel (%p232) target = $region20
        $region19: #{_forward_stacked.4} parent=11 // pred_region
          _
        $region20: #{_forward_stacked.4} parent=11 // pred_fallthru
          _
      $region12: #{_forward_stacked.4} parent=5 // pred_fallthru
        _
      %p235 = scmp.lt.s32.totalorder %s13, 2
      // Predicated region
      $region21: #{_forward_stacked.4} parent=5 // pred_check
        %p236 = pneg %p235
      $region22: #{_forward_stacked.4} parent=5 // pred_check_branch
        %238 = sbr.rel (%p236) target = $region24
      $region23: #{_forward_stacked.4} parent=5 // pred_region
        // Predicated region
        $region25: #{_forward_stacked.4} parent=23 // pred_check
          %p239 = pneg %p45
        $region26: #{_forward_stacked.4} parent=23 // pred_check_branch
          %241 = sbr.rel (%p239) target = $region28
        $region27: #{_forward_stacked.4} parent=23 // pred_region
          %p242 = scmp.lt.s32.totalorder %s20, 1
          %s243 = scalar_select %p242, %s20, 1
          %s244 = smul.addr %s243, 2
          %s245 = smul.addr %s244, 8
          %s246 = scalar_lea.vmem %s0, %s245
        $region28: #{_forward_stacked.4} parent=23 // pred_fallthru
          _
        // Predicated region
        $region29: #{_forward_stacked.4} parent=23 // pred_check
          %p247 = pneg %p71
        $region30: #{_forward_stacked.4} parent=23 // pred_check_branch
          %249 = sbr.rel (%p247) target = $region32
        $region31: #{_forward_stacked.4} parent=23 // pred_region
          %p250 = scmp.lt.s32.totalorder %s20, 1
          %s251 = scalar_select %p250, %s20, 1
          %s252 = scalar_lea.vmem %s1, %s251
        $region32: #{_forward_stacked.4} parent=23 // pred_fallthru
          _
        // Predicated region
        $region33: #{_forward_stacked.4} parent=23 // pred_check
          %p253 = pneg %p99
        $region34: #{_forward_stacked.4} parent=23 // pred_check_branch
          %255 = sbr.rel (%p253) target = $region36
        $region35: #{_forward_stacked.4} parent=23 // pred_region
          %s256 = smul.u32 2, %s21
          %p257 = scmp.lt.s32.totalorder %s20, 1
          %s258 = scalar_select %p257, %s20, 1
          %p259 = scmp.lt.s32.totalorder %s256, 1
          %s260 = scalar_select %p259, %s256, 1
          %s261 = smul.addr %s258, 2
          %s262 = sadd.s32 %s260, %s261
          %s263 = smul.addr %s262, 8
          %s264 = scalar_lea.vmem %s2, %s263
          %s265 = smul.u32 2, %s21
        $region36: #{_forward_stacked.4} parent=23 // pred_fallthru
          _
        // Predicated region
        $region37: #{_forward_stacked.4} parent=23 // pred_check
          %p266 = pneg %p127
        $region38: #{_forward_stacked.4} parent=23 // pred_check_branch
          %268 = sbr.rel (%p266) target = $region40
        $region39: #{_forward_stacked.4} parent=23 // pred_region
          %s269 = smul.u32 2, %s21
          %p270 = scmp.lt.s32.totalorder %s20, 1
          %s271 = scalar_select %p270, %s20, 1
          %p272 = scmp.lt.s32.totalorder %s269, 1
          %s273 = scalar_select %p272, %s269, 1
          %s274 = smul.addr %s271, 2
          %s275 = sadd.s32 %s273, %s274
          %s276 = smul.addr %s275, 2
          %s277 = scalar_lea.vmem %s3, %s276
          %s278 = smul.u32 2, %s21
        $region40: #{_forward_stacked.4} parent=23 // pred_fallthru
          _
      $region24: #{_forward_stacked.4} parent=5 // pred_fallthru
        _
      %p279 = scmp.le.s32.totalorder 1, %s13
      %p280 = scmp.lt.s32.totalorder %s13, 3
      %p281 = pnand %p279, %p280
      %p282 = pneg %p281
      // Predicated region
      $region41: #{_forward_stacked.4} parent=5 // pred_check
        _
      $region42: #{_forward_stacked.4} parent=5 // pred_check_branch
        %284 = sbr.rel (%p281) target = $region44
      $region43: #{_forward_stacked.4} parent=5 // pred_region
        %s285 = ssub.s32 %s13, 1
        // Predicated region
        $region45: #{_forward_stacked.4} parent=43 // pred_check
          %p286 = pneg %p154
        $region46: #{_forward_stacked.4} parent=43 // pred_check_branch
          %288 = sbr.rel (%p286) target = $region48
        $region47: #{_forward_stacked.4} parent=43 // pred_region
          %290 = dma.done [#allocation5], 512
        $region48: #{_forward_stacked.4} parent=43 // pred_fallthru
          _
        %p291 = scmp.lt.s32.totalorder %s22, 1
        %s292 = scalar_select %p291, %s22, 1
        %s293 = smul.addr %s292, 2
        %s294 = smul.addr %s293, 8
        %s295 = scalar_lea.vmem %s0, %s294
        %p296 = pneg %p51
        %p297 = pneg %p48
        %p298 = scmp.lt.s32.totalorder %s22, 1
        %s299 = scalar_select %p298, %s22, 1
        %s300 = scalar_lea.vmem %s1, %s299
        %p301 = pneg %p77
        %p302 = pneg %p74
        %s303 = smul.u32 2, %s23
        %p304 = scmp.lt.s32.totalorder %s22, 1
        %s305 = scalar_select %p304, %s22, 1
        %p306 = scmp.lt.s32.totalorder %s303, 1
        %s307 = scalar_select %p306, %s303, 1
        %s308 = smul.addr %s305, 2
        %s309 = sadd.s32 %s307, %s308
        %s310 = smul.addr %s309, 8
        %s311 = scalar_lea.vmem %s2, %s310
        %p312 = pneg %p105
        %p313 = pneg %p102
        %s314 = smul.u32 2, %s23
        %p315 = scmp.lt.s32.totalorder %s22, 1
        %s316 = scalar_select %p315, %s22, 1
        %p317 = scmp.lt.s32.totalorder %s314, 1
        %s318 = scalar_select %p317, %s314, 1
        %s319 = smul.addr %s316, 2
        %s320 = sadd.s32 %s318, %s319
        %s321 = smul.addr %s320, 2
        %s322 = scalar_lea.vmem %s3, %s321
        %p323 = pneg %p133
        %p324 = pneg %p130
        %p325 = pneg %p154
        %p326 = pneg %p151
        %p327 = pneg %p175
        %p328 = pneg %p172
        %p329 = pneg %p203
        %p330 = pneg %p200
        %s331 = smul.u32 2, %s23
        %p332 = scmp.lt.s32.totalorder %s22, 1
        %s333 = scalar_select %p332, %s22, 1
        %p334 = scmp.lt.s32.totalorder %s331, 1
        %s335 = scalar_select %p334, %s331, 1
        %s336 = smul.addr %s333, 2
        %s337 = sadd.s32 %s335, %s336
        %s338 = smul.addr %s337, 8
        %s339 = scalar_lea.vmem %s6, %s338
        %p340 = scmp.lt.s32.totalorder %s22, 1
        %s341 = scalar_select %p340, %s22, 1
        %s342 = smul.addr %s341, 2
        %s343 = smul.addr %s342, 8
        %s344 = scalar_lea.vmem %s0, %s343
        %p345 = scmp.lt.s32.totalorder %s22, 1
        %s346 = scalar_select %p345, %s22, 1
        %s347 = scalar_lea.vmem %s1, %s346
        %s348 = smul.u32 2, %s23
        %p349 = scmp.lt.s32.totalorder %s22, 1
        %s350 = scalar_select %p349, %s22, 1
        %p351 = scmp.lt.s32.totalorder %s348, 1
        %s352 = scalar_select %p351, %s348, 1
        %s353 = smul.addr %s350, 2
        %s354 = sadd.s32 %s352, %s353
        %s355 = smul.addr %s354, 8
        %s356 = scalar_lea.vmem %s2, %s355
        %s357 = smul.u32 2, %s23
        %s358 = smul.u32 2, %s23
        %p359 = scmp.lt.s32.totalorder %s22, 1
        %s360 = scalar_select %p359, %s22, 1
        %p361 = scmp.lt.s32.totalorder %s358, 1
        %s362 = scalar_select %p361, %s358, 1
        %s363 = smul.addr %s360, 2
        %s364 = sadd.s32 %s362, %s363
        %s365 = smul.addr %s364, 2
        %s366 = scalar_lea.vmem %s3, %s365
        %s367 = smul.u32 2, %s23
        %s368 = smul.u32 2, %s23
        %p369 = scmp.lt.s32.totalorder %s22, 1
        %s370 = scalar_select %p369, %s22, 1
        %p371 = scmp.lt.s32.totalorder %s368, 1
        %s372 = scalar_select %p371, %s368, 1
        %s373 = smul.addr %s370, 2
        %s374 = sadd.s32 %s372, %s373
        %s375 = smul.addr %s374, 8
        %s376 = scalar_lea.vmem %s6, %s375
        %s377 = smul.u32 2, %s23
        %p379 = scmp.eq.s32.totalorder %s23, 0
        // Predicated region
        $region49: #{_forward_stacked.4} parent=43 // pred_check
          %p380 = pneg %p379
        $region50: #{_forward_stacked.4} parent=43 // pred_check_branch
          %382 = sbr.rel (%p380) target = $region52
        $region51: #{_forward_stacked.4} parent=43 // pred_region
          %v383 = vld [vmem:[%s344] sm:$0xff]
          %v384 = vld [vmem:[%s344 + $0x8] sm:$0xff]
          %v385 = vld [vmem:[#allocation4] sm:$0xff]
          %v386 = vld [vmem:[#allocation4 + $0x8] sm:$0xff]
          %v387 = vld [vmem:[#allocation4 + $0x10] sm:$0xff]
          %v388 = vld [vmem:[#allocation4 + $0x18] sm:$0xff]
          %vm389 = vcmask 261120
          %v391 = vsel %vm389, %v383, 0
          %v394 = vsel %vm389, %v384, 0
          %396 = vmatpush.msra.mxu0 0.0
          %397 = vmatpush.msra.mxu0 0.0
          %398 = vmatpush.msra.mxu0 0.0
          %399 = vmatpush.msra.mxu0 0.0
          %400 = vmatpush.msra.mxu0 0.0
          %401 = vmatpush.msra.mxu0 0.0
          %402 = vmatpush.msra.mxu0 0.0
          %403 = vmatpush.msra.mxu0 0.0
          %404 = vmatpush.msra.mxu0 0.0
          %405 = vmatpush.msra.mxu0 0.0
          %406 = vmatpush.msra.mxu0 0.0
          %407 = vmatpush.msra.mxu0 0.0
          %408 = vmatpush.msra.mxu0 %v388
          %409 = vmatpush.msra.mxu0 %v387
          %410 = vmatpush.msra.mxu0 %v386
          %411 = vmatpush.msra.mxu0 %v385
          %412 = vmatmul.f32.gmra.mxu0 %v391
          %v413 = vpop.f32.mrf.mxu0
          %v414 = vadd.f32 0.0, %v413
          %415 = vmatmul.f32.gmra.mxu0 %v394
          %v416 = vpop.f32.mrf.mxu0
          %v417 = vadd.f32 0.0, %v416
          %418 = vdwg.mxu0
          %419 = vst.msk [vmem:[#allocation2] sm:$0xff] %vm389, %v414
          %420 = vst.msk [vmem:[#allocation2 + $0x8] sm:$0xff] %vm389, %v417
          %v421 = vld [vmem:[%s5] sm:$0x1]
          %v423 = vsel %vm389, %v421, 0
          %v426 = vsel %vm389, %v414, 0
          %v429 = vsel %vm389, %v417, 0
          %431 = vmatpush.xpose.msra.mxu0 0.0
          %432 = vmatpush.xpose.msra.mxu0 0.0
          %433 = vmatpush.xpose.msra.mxu0 0.0
          %434 = vmatpush.xpose.msra.mxu0 0.0
          %435 = vmatpush.xpose.msra.mxu0 0.0
          %436 = vmatpush.xpose.msra.mxu0 0.0
          %437 = vmatpush.xpose.msra.mxu0 0.0
          %438 = vmatpush.xpose.msra.mxu0 0.0
          %439 = vmatpush.xpose.msra.mxu0 0.0
          %440 = vmatpush.xpose.msra.mxu0 0.0
          %441 = vmatpush.xpose.msra.mxu0 0.0
          %442 = vmatpush.xpose.msra.mxu0 0.0
          %443 = vmatpush.xpose.msra.mxu0 0.0
          %444 = vmatpush.xpose.msra.mxu0 0.0
          %445 = vmatpush.xpose.msra.mxu0 %v429
          %446 = vmatpush.xpose.msra.mxu0 %v426
          %447 = vmatmul.f32.gmra.mxu0 %v423
          %v448 = vpop.f32.mrf.mxu0
          %v449 = vadd.f32 0.0, %v448
          %450 = vdwg.mxu0
          %v451 = vmul.f32 %v449, 0.002
          %vm452 = vcmask 122880
          %453 = vst.msk [vmem:[#allocation3] sm:$0x1] %vm452, %v451
        $region52: #{_forward_stacked.4} parent=43 // pred_fallthru
          _
        %v454 = vld [vmem:[%s347] sm:$0x1]
        %v455 = vld [vmem:[%s356] sm:$0xff]
        %v456 = vld [vmem:[%s356 + $0x8] sm:$0xff]
        %v458 = vperm.slane %v454, 0
        %461 = vset.pattern.permute.xlu0 0
        %462 = vperm.xlu0 %461, %v455
        %v463 = vpop.permute.xlu0 %462
        %466 = vset.pattern.permute.xlu0 0
        %467 = vperm.xlu0 %466, %v456
        %v468 = vpop.permute.xlu0 %467
        %v470 = vsub.f32 %v458, %v463
        %v471 = vsub.f32 %v458, %v468
        %v472 = vand.u32 2147483647, %v470
        %v473 = vand.u32 2147483647, %v471
        %v474 = vsub.f32 0.0, %v472
        %v475 = vsub.f32 0.0, %v473
        %v476 = vld [vmem:[#allocation3] sm:$0x1]
        %v478 = vperm.slane %v476, 0
        %v480 = vmul.f32 %v478, %v474
        %v481 = vmul.f32 %v478, %v475
        %v482 = vmul.f32 %v480, 1.442695
        %v483 = vpow.pop %v482
        %v484 = vmul.f32 %v481, 1.442695
        %v485 = vpow.pop %v484
        %v486 = vld [vmem:[%s366] sm:$0x3]
        %v487 = vld [vmem:[%s366 + $0x2] sm:$0x3]
        %v488 = vunpack.c.0.s8 %v486
        %v489 = vunpack.c.0.s8 %v487
        %vm490 = vcmp.ne.s32.totalorder %v488, 0
        %vm491 = vcmp.ne.s32.totalorder %v489, 0
        %v492 = vsel %vm490, %v483, -1e+30
        %v493 = vsel %vm491, %v485, -1e+30
        %vm494 = vcmask 130048
        %v495 = vsel %vm494, %v492, -inf
        %496 = vmax.xlane.f32.xlu0 %v495
        %v497 = vpop.xlane.xlu0 %496
        %v498 = vsel %vm494, %v493, -inf
        %499 = vmax.xlane.f32.xlu0 %v498
        %v500 = vpop.xlane.xlu0 %499
        %v501 = vsub.f32 %v492, %v497
        %v502 = vsub.f32 %v493, %v500
        %v503 = vmul.f32 %v501, 1.442695
        %v504 = vpow.pop %v503
        %v505 = vmul.f32 %v502, 1.442695
        %v506 = vpow.pop %v505
        %v507 = vsel %vm494, %v504, 0.0
        %508 = vadd.xlane.f32.xlu0 %v507
        %v509 = vpop.xlane.xlu0 %508
        %v510 = vsel %vm494, %v506, 0.0
        %511 = vadd.xlane.f32.xlu0 %v510
        %v512 = vpop.xlane.xlu0 %511
        %v513 = vrcp.pop %v509
        %v514 = vrcp.pop %v512
        %v515 = vmul.f32 %v504, %v513
        %v516 = vmul.f32 %v506, %v514
        %v517 = vpack.c.bf16 %v516, %v515
        %v518 = vld [vmem:[#allocation2] sm:$0xff]
        %v519 = vld [vmem:[#allocation2 + $0x8] sm:$0xff]
        %v520 = vpack.c.bf16 %v519, %v518
        %v522 = vsel %vm494, %v517, 0
        %524 = vmatpush.bf16.msra.mxu0 0
        %525 = vmatpush.bf16.msra.mxu0 0
        %526 = vmatpush.bf16.msra.mxu0 0
        %527 = vmatpush.bf16.msra.mxu0 0
        %528 = vmatpush.bf16.msra.mxu0 0
        %529 = vmatpush.bf16.msra.mxu0 0
        %530 = vmatpush.bf16.msra.mxu0 0
        %531 = vmatpush.bf16.msra.mxu0 %v520
        %532 = vmatmul.bf16.gmra.mxu0 %v522
        %v533 = vpop.f32.mrf.mxu0
        %v534 = vadd.f32 0.0, %v533
        %v535 = vpop.f32.mrf.mxu0
        %v536 = vadd.f32 0.0, %v535
        %537 = vdwg.mxu0
        %vm538 = vcmask 261120
        %539 = vst.msk [vmem:[%s376] sm:$0xff] %vm538, %v534
        %540 = vst.msk [vmem:[%s376 + $0x8] sm:$0xff] %vm538, %v536
        %s541 = smul.u32 2, %s23
        %p542 = scmp.lt.s32.totalorder %s22, 1
        %s543 = scalar_select %p542, %s22, 1
        %p544 = scmp.lt.s32.totalorder %s541, 1
        %s545 = scalar_select %p544, %s541, 1
        %s546 = smul.addr %s543, 2
        %s547 = sadd.s32 %s545, %s546
        %s548 = smul.addr %s547, 8
        %s549 = scalar_lea.vmem %s6, %s548
        // Predicated region
        $region53: #{_forward_stacked.4} parent=43 // pred_check
          %p550 = pneg %p200
        $region54: #{_forward_stacked.4} parent=43 // pred_check_branch
          %552 = sbr.rel (%p550) target = $region56
        $region55: #{_forward_stacked.4} parent=43 // pred_region
          %s553 = smul.u32 2, %s23
        $region56: #{_forward_stacked.4} parent=43 // pred_fallthru
          _
      $region44: #{_forward_stacked.4} parent=5 // pred_fallthru
        _
      %p554 = scmp.le.s32.totalorder 2, %s13
      // Predicated region
      $region57: #{_forward_stacked.4} parent=5 // pred_check
        %p555 = pneg %p554
      $region58: #{_forward_stacked.4} parent=5 // pred_check_branch
        %557 = sbr.rel (%p555) target = $region60
      $region59: #{_forward_stacked.4} parent=5 // pred_region
        %s558 = ssub.s32 %s13, 2
        // Predicated region
        $region61: #{_forward_stacked.4} parent=59 // pred_check
          %p559 = pneg %p206
        $region62: #{_forward_stacked.4} parent=59 // pred_check_branch
          %561 = sbr.rel (%p559) target = $region64
        $region63: #{_forward_stacked.4} parent=59 // pred_region
          %s562 = smul.u32 2, %s25
          %p563 = scmp.lt.s32.totalorder %s24, 1
          %s564 = scalar_select %p563, %s24, 1
          %p565 = scmp.lt.s32.totalorder %s562, 1
          %s566 = scalar_select %p565, %s562, 1
          %s567 = smul.addr %s564, 2
          %s568 = sadd.s32 %s566, %s567
          %s569 = smul.addr %s568, 8
          %s570 = scalar_lea.vmem %s6, %s569
        $region64: #{_forward_stacked.4} parent=59 // pred_fallthru
          _
      $region60: #{_forward_stacked.4} parent=5 // pred_fallthru
        _
    $region6: #{_forward_stacked.4} parent=1 // loop_footer
      %s17 = sadd.s32 1, %s13
    $region7: #{_forward_stacked.4} parent=1 // loop_footer_branch
      %12 = sbr.rel target = $region3
    $region8: #{_forward_stacked.4} parent=1 // loop_exit
      _
    %571 = vsyncpa [#allocation5], 1
    %s572 = scalar_lea.sflag [#allocation5], 1
    %573 = vsyncpa %s572, 1

// kernel: _forward_stacked.3
$region0: #{_forward_stacked.3}
  #allocation0 [shape = 'u32[]', space=smem, size = 0x4, offset = 0x4, fixed_abs, tag = 'smem constant byte address 0x4 - core index']
  #allocation1 [shape = 'u32[72,128]{1,0:T(1,128)}', space=vmem, size = 0x9000, scoped, tag = 'internal scratch']
  #allocation2 [shape = 'f32[16,32]{1,0:T(8,128)}', space=vmem, size = 0x2000, scoped, tag = 'scratch operand']
  #allocation3 [shape = 'f32[1,16]{1,0:T(1,128)}', space=vmem, size = 0x200, scoped, tag = 'scratch operand']
  %s0 = inlined_call_operand.hbm [shape: f32[2,16,32], index: 0, kind: input, shape index: {}]
  %s1 = inlined_call_operand.vmem [shape: f32[2,1,16], index: 1, kind: input, shape index: {}]
  %s2 = inlined_call_operand.vmem [shape: f32[2,16,1], index: 2, kind: input, shape index: {}]
  %s3 = inlined_call_operand.vmem [shape: s8[2,16,16], index: 3, kind: input, shape index: {}]
  %s4 = inlined_call_operand.hbm [shape: f32[32,32], index: 4, kind: input, shape index: {}]
  %s5 = inlined_call_operand.vmem [shape: f32[1,32], index: 5, kind: input, shape index: {}]
  %s6 = inlined_call_operand.vmem [shape: f32[2,16,32], index: 6, kind: output, shape index: {}]
  %s7 = sld [smem:[#allocation0]]
  $region69: #{_forward_stacked.3} parent=0
    _
  %s9 = ssub.s32 1, %s7
  %s10 = scalar_select 0, %s9, %s7
  $region1: #{_forward_stacked.3} parent=0
    #allocation4 [shape = 'u8[16384]{0}', space=vmem, size = 0x4000, scoped, tag = 'input window, operand 0']
    #allocation5 [shape = 's32[2]{0}', space=sflag, size = 0x8, scoped, tag = 'scoped memory for _forward_stacked.3']
    #allocation6 [shape = 'u8[16384]{0}', space=vmem, size = 0x4000, scoped, tag = 'input window, operand 4, single buffered']
    #allocation7 [shape = 's32[1]{0}', space=sflag, size = 0x4, scoped, tag = 'scoped memory for _forward_stacked.3']
    %11 = vsyncpa [#allocation5], 0
    %s12 = scalar_lea.sflag [#allocation5], 1
    %13 = vsyncpa %s12, 0
    %14 = vsyncpa [#allocation7], 0
    loop: start=0, step=1, limit=4
    $region2: #{_forward_stacked.3} parent=1 // loop_pre_header
      _
    $region3: #{_forward_stacked.3} parent=1 // loop_header
      %s16 = sphi 0, %s20
      %p17 = scmp.ge.s32.totalorder %s16, 4
      %s23 = sphi 0, %s35
      %s24 = sphi 0, %s31
      %s25 = sphi 0, %s23
      %s26 = sphi 0, %s24
      %s27 = sphi 0, %s25
      %s28 = sphi 0, %s26
      %s38 = sphi 0, %s40
      %s41 = sphi 0, %s38
      %s42 = sphi 0, %s41
      %s58 = sphi 0, %s42
      %s64 = sphi 0, %s66
      %s67 = sphi 0, %s64
      %s68 = sphi 0, %s67
      %s84 = sphi 0, %s68
      %s92 = sphi 0, %s94
      %s95 = sphi 0, %s92
      %s96 = sphi 0, %s95
      %s112 = sphi 0, %s96
      %s120 = sphi 0, %s122
      %s123 = sphi 0, %s120
      %s124 = sphi 0, %s123
      %s140 = sphi 0, %s124
      %s144 = sphi 0, %s144
      %s146 = sphi 0, %s144
      %s147 = sphi 0, %s146
      %s161 = sphi 0, %s147
      %s165 = sphi 0, %s165
      %s167 = sphi 0, %s165
      %s168 = sphi 0, %s167
      %s182 = sphi 0, %s168
      %s190 = sphi 0, %s192
      %s193 = sphi 0, %s190
      %s194 = sphi 0, %s193
      %s210 = sphi 0, %s194
    $region4: #{_forward_stacked.3} parent=1 // loop_header_branch
      %19 = sbr.rel (%p17) target = $region8
    $region5: #{_forward_stacked.3} parent=1 // loop_body
      %s21 = ssub.s32 %s16, 1
      %s22 = ssub.s32 %s16, 2
      %s29 = sadd.s32 1, %s24
      %p30 = scmp.ge.s32.totalorder %s29, 1
      %s31 = scalar_select %p30, 0, %s29
      %s32 = sadd.s32 1, %s23
      %s33 = scalar_select %p30, %s32, %s23
      %p34 = scmp.ge.s32.totalorder %s33, 2
      %s35 = scalar_select %p34, 0, %s33
      %s36 = ssub.s32 %s23, %s35
      %p37 = scmp.eq.s32.totalorder %s36, 0
      %s39 = sadd.s32 %s38, 1
      %s40 = scalar_select %p37, %s38, %s39
      %p43 = pneg %p37
      %p44 = scmp.eq.s32.totalorder %s16, 1
      %p45 = por %p43, %p44
      %p46 = scmp.ne.s32.totalorder %s38, %s41
      %p47 = scmp.eq.s32.totalorder %s16, 0
      %p48 = por %p46, %p47
      %p49 = scmp.ne.s32.totalorder %s38, %s41
      %p50 = scmp.eq.s32.totalorder %s21, 1
      %p51 = por %p49, %p50
      %p52 = scmp.ne.s32.totalorder %s41, %s42
      %p53 = scmp.eq.s32.totalorder %s21, 0
      %p54 = por %p52, %p53
      %p55 = scmp.ne.s32.totalorder %s41, %s42
      %p56 = scmp.eq.s32.totalorder %s22, 1
      %p57 = por %p55, %p56
      %p59 = scmp.ne.s32.totalorder %s42, %s58
      %p60 = scmp.eq.s32.totalorder %s22, 0
      %p61 = por %p59, %p60
      %s62 = ssub.s32 %s23, %s35
      %p63 = scmp.eq.s32.totalorder %s62, 0
      %s65 = sadd.s32 %s64, 1
      %s66 = scalar_select %p63, %s64, %s65
      %p69 = pneg %p63
      %p70 = scmp.eq.s32.totalorder %s16, 1
      %p71 = por %p69, %p70
      %p72 = scmp.ne.s32.totalorder %s64, %s67
      %p73 = scmp.eq.s32.totalorder %s16, 0
      %p74 = por %p72, %p73
      %p75 = scmp.ne.s32.totalorder %s64, %s67
      %p76 = scmp.eq.s32.totalorder %s21, 1
      %p77 = por %p75, %p76
      %p78 = scmp.ne.s32.totalorder %s67, %s68
      %p79 = scmp.eq.s32.totalorder %s21, 0
      %p80 = por %p78, %p79
      %p81 = scmp.ne.s32.totalorder %s67, %s68
      %p82 = scmp.eq.s32.totalorder %s22, 1
      %p83 = por %p81, %p82
      %p85 = scmp.ne.s32.totalorder %s68, %s84
      %p86 = scmp.eq.s32.totalorder %s22, 0
      %p87 = por %p85, %p86
      %s88 = ssub.s32 %s23, %s35
      %s89 = ssub.s32 %s24, %s31
      %s90 = sor.u32 %s88, %s89
      %p91 = scmp.eq.s32.totalorder %s90, 0
      %s93 = sadd.s32 %s92, 1
      %s94 = scalar_select %p91, %s92, %s93
      %p97 = pneg %p91
      %p98 = scmp.eq.s32.totalorder %s16, 1
      %p99 = por %p97, %p98
      %p100 = scmp.ne.s32.totalorder %s92, %s95
      %p101 = scmp.eq.s32.totalorder %s16, 0
      %p102 = por %p100, %p101
      %p103 = scmp.ne.s32.totalorder %s92, %s95
      %p104 = scmp.eq.s32.totalorder %s21, 1
      %p105 = por %p103, %p104
      %p106 = scmp.ne.s32.totalorder %s95, %s96
      %p107 = scmp.eq.s32.totalorder %s21, 0
      %p108 = por %p106, %p107
      %p109 = scmp.ne.s32.totalorder %s95, %s96
      %p110 = scmp.eq.s32.totalorder %s22, 1
      %p111 = por %p109, %p110
      %p113 = scmp.ne.s32.totalorder %s96, %s112
      %p114 = scmp.eq.s32.totalorder %s22, 0
      %p115 = por %p113, %p114
      %s116 = ssub.s32 %s23, %s35
      %s117 = ssub.s32 %s24, %s31
      %s118 = sor.u32 %s116, %s117
      %p119 = scmp.eq.s32.totalorder %s118, 0
      %s121 = sadd.s32 %s120, 1
      %s122 = scalar_select %p119, %s120, %s121
      %p125 = pneg %p119
      %p126 = scmp.eq.s32.totalorder %s16, 1
      %p127 = por %p125, %p126
      %p128 = scmp.ne.s32.totalorder %s120, %s123
      %p129 = scmp.eq.s32.totalorder %s16, 0
      %p130 = por %p128, %p129
      %p131 = scmp.ne.s32.totalorder %s120, %s123
      %p132 = scmp.eq.s32.totalorder %s21, 1
      %p133 = por %p131, %p132
      %p134 = scmp.ne.s32.totalorder %s123, %s124
      %p135 = scmp.eq.s32.totalorder %s21, 0
      %p136 = por %p134, %p135
      %p137 = scmp.ne.s32.totalorder %s123, %s124
      %p138 = scmp.eq.s32.totalorder %s22, 1
      %p139 = por %p137, %p138
      %p141 = scmp.ne.s32.totalorder %s124, %s140
      %p142 = scmp.eq.s32.totalorder %s22, 0
      %p143 = por %p141, %p142
      %s145 = sadd.s32 %s144, 1
      %p148 = scmp.eq.s32.totalorder %s16, 1
      %p149 = scmp.ne.s32.totalorder %s144, %s146
      %p150 = scmp.eq.s32.totalorder %s16, 0
      %p151 = por %p149, %p150
      %p152 = scmp.ne.s32.totalorder %s144, %s146
      %p153 = scmp.eq.s32.totalorder %s21, 1
      %p154 = por %p152, %p153
      %p155 = scmp.ne.s32.totalorder %s146, %s147
      %p156 = scmp.eq.s32.totalorder %s21, 0
      %p157 = por %p155, %p156
      %p158 = scmp.ne.s32.totalorder %s146, %s147
      %p159 = scmp.eq.s32.totalorder %s22, 1
      %p160 = por %p158, %p159
      %p162 = scmp.ne.s32.totalorder %s147, %s161
      %p163 = scmp.eq.s32.totalorder %s22, 0
      %p164 = por %p162, %p163
      %s166 = sadd.s32 %s165, 1
      %p169 = scmp.eq.s32.totalorder %s16, 1
      %p170 = scmp.ne.s32.totalorder %s165, %s167
      %p171 = scmp.eq.s32.totalorder %s16, 0
      %p172 = por %p170, %p171
      %p173 = scmp.ne.s32.totalorder %s165, %s167
      %p174 = scmp.eq.s32.totalorder %s21, 1
      %p175 = por %p173, %p174
      %p176 = scmp.ne.s32.totalorder %s167, %s168
      %p177 = scmp.eq.s32.totalorder %s21, 0
      %p178 = por %p176, %p177
      %p179 = scmp.ne.s32.totalorder %s167, %s168
      %p180 = scmp.eq.s32.totalorder %s22, 1
      %p181 = por %p179, %p180
      %p183 = scmp.ne.s32.totalorder %s168, %s182
      %p184 = scmp.eq.s32.totalorder %s22, 0
      %p185 = por %p183, %p184
      %s186 = ssub.s32 %s23, %s35
      %s187 = ssub.s32 %s24, %s31
      %s188 = sor.u32 %s186, %s187
      %p189 = scmp.eq.s32.totalorder %s188, 0
      %s191 = sadd.s32 %s190, 1
      %s192 = scalar_select %p189, %s190, %s191
      %p195 = pneg %p189
      %p196 = scmp.eq.s32.totalorder %s16, 1
      %p197 = por %p195, %p196
      %p198 = scmp.ne.s32.totalorder %s190, %s193
      %p199 = scmp.eq.s32.totalorder %s16, 0
      %p200 = por %p198, %p199
      %p201 = scmp.ne.s32.totalorder %s190, %s193
      %p202 = scmp.eq.s32.totalorder %s21, 1
      %p203 = por %p201, %p202
      %p204 = scmp.ne.s32.totalorder %s193, %s194
      %p205 = scmp.eq.s32.totalorder %s21, 0
      %p206 = por %p204, %p205
      %p207 = scmp.ne.s32.totalorder %s193, %s194
      %p208 = scmp.eq.s32.totalorder %s22, 1
      %p209 = por %p207, %p208
      %p211 = scmp.ne.s32.totalorder %s194, %s210
      %p212 = scmp.eq.s32.totalorder %s22, 0
      %p213 = por %p211, %p212
      %p214 = scmp.le.s32.totalorder 1, %s16
      %p215 = scmp.lt.s32.totalorder %s16, 3
      %p216 = pnand %p214, %p215
      %p217 = pneg %p216
      // Predicated region
      $region9: #{_forward_stacked.3} parent=5 // pred_check
        _
      $region10: #{_forward_stacked.3} parent=5 // pred_check_branch
        %219 = sbr.rel (%p216) target = $region12
      $region11: #{_forward_stacked.3} parent=5 // pred_region
        %s220 = ssub.s32 %s16, 1
        // Predicated region
        $region13: #{_forward_stacked.3} parent=11 // pred_check
          %p221 = pneg %p157
        $region14: #{_forward_stacked.3} parent=11 // pred_check_branch
          %223 = sbr.rel (%p221) target = $region16
        $region15: #{_forward_stacked.3} parent=11 // pred_region
          %225 = vsyncadd [#allocation7], 0
          %s226 = sshll.u32 %s4, 4
          %s227 = int_to_ptr.hbm [resolvable:$true] %s226
          %s228 = sshll.u32 [#allocation6], 4
          %s229 = int_to_ptr.vmem [resolvable:$true] %s228
          %234 = dma.hbm_to_vmem [thread:$0]  %s227, 512, %s229, [#allocation7], 128, 128, 8
        $region16: #{_forward_stacked.3} parent=11 // pred_fallthru
          _
        // Predicated region
        $region17: #{_forward_stacked.3} parent=11 // pred_check
          %p235 = pneg %p178
        $region18: #{_forward_stacked.3} parent=11 // pred_check_branch
          %237 = sbr.rel (%p235) target = $region20
        $region19: #{_forward_stacked.3} parent=11 // pred_region
          _
        $region20: #{_forward_stacked.3} parent=11 // pred_fallthru
          _
      $region12: #{_forward_stacked.3} parent=5 // pred_fallthru
        _
      %p238 = scmp.lt.s32.totalorder %s16, 2
      // Predicated region
      $region21: #{_forward_stacked.3} parent=5 // pred_check
        %p239 = pneg %p238
      $region22: #{_forward_stacked.3} parent=5 // pred_check_branch
        %241 = sbr.rel (%p239) target = $region24
      $region23: #{_forward_stacked.3} parent=5 // pred_region
        // Predicated region
        $region25: #{_forward_stacked.3} parent=23 // pred_check
          %p242 = pneg %p48
        $region26: #{_forward_stacked.3} parent=23 // pred_check_branch
          %244 = sbr.rel (%p242) target = $region28
        $region27: #{_forward_stacked.3} parent=23 // pred_region
          %s245 = sand.u32 %s38, 1
          %s246 = scalar_lea.sflag [#allocation5], %s245
          %s247 = sand.u32 %s38, 1
          %s248 = smul.addr %s247, 16
          %s249 = scalar_lea.vmem [#allocation4], %s248
          %251 = vsyncadd %s246, 0
          %s252 = smul.addr %s23, 2
          %s253 = smul.addr %s252, 8
          %s254 = scalar_lea.hbm %s0, %s253
          %s255 = sshll.u32 %s254, 4
          %s256 = int_to_ptr.hbm [resolvable:$true] %s255
          %s257 = sshll.u32 %s249, 4
          %s258 = int_to_ptr.vmem [resolvable:$true] %s257
          %263 = dma.hbm_to_vmem [thread:$0]  %s256, 256, %s258, %s246, 128, 128, 8
        $region28: #{_forward_stacked.3} parent=23 // pred_fallthru
          _
        // Predicated region
        $region29: #{_forward_stacked.3} parent=23 // pred_check
          %p264 = pneg %p74
        $region30: #{_forward_stacked.3} parent=23 // pred_check_branch
          %266 = sbr.rel (%p264) target = $region32
        $region31: #{_forward_stacked.3} parent=23 // pred_region
          %p267 = scmp.lt.s32.totalorder %s23, 1
          %s268 = scalar_select %p267, %s23, 1
          %s269 = scalar_lea.vmem %s1, %s268
        $region32: #{_forward_stacked.3} parent=23 // pred_fallthru
          _
        // Predicated region
        $region33: #{_forward_stacked.3} parent=23 // pred_check
          %p270 = pneg %p102
        $region34: #{_forward_stacked.3} parent=23 // pred_check_branch
          %272 = sbr.rel (%p270) target = $region36
        $region35: #{_forward_stacked.3} parent=23 // pred_region
          %s273 = smul.u32 2, %s24
          %p274 = scmp.lt.s32.totalorder %s23, 1
          %s275 = scalar_select %p274, %s23, 1
          %p276 = scmp.lt.s32.totalorder %s273, 1
          %s277 = scalar_select %p276, %s273, 1
          %s278 = smul.addr %s275, 2
          %s279 = sadd.s32 %s277, %s278
          %s280 = smul.addr %s279, 8
          %s281 = scalar_lea.vmem %s2, %s280
          %s282 = smul.u32 2, %s24
        $region36: #{_forward_stacked.3} parent=23 // pred_fallthru
          _
        // Predicated region
        $region37: #{_forward_stacked.3} parent=23 // pred_check
          %p283 = pneg %p130
        $region38: #{_forward_stacked.3} parent=23 // pred_check_branch
          %285 = sbr.rel (%p283) target = $region40
        $region39: #{_forward_stacked.3} parent=23 // pred_region
          %s286 = smul.u32 2, %s24
          %p287 = scmp.lt.s32.totalorder %s23, 1
          %s288 = scalar_select %p287, %s23, 1
          %p289 = scmp.lt.s32.totalorder %s286, 1
          %s290 = scalar_select %p289, %s286, 1
          %s291 = smul.addr %s288, 2
          %s292 = sadd.s32 %s290, %s291
          %s293 = smul.addr %s292, 2
          %s294 = scalar_lea.vmem %s3, %s293
          %s295 = smul.u32 2, %s24
        $region40: #{_forward_stacked.3} parent=23 // pred_fallthru
          _
      $region24: #{_forward_stacked.3} parent=5 // pred_fallthru
        _
      %p296 = scmp.le.s32.totalorder 1, %s16
      %p297 = scmp.lt.s32.totalorder %s16, 3
      %p298 = pnand %p296, %p297
      %p299 = pneg %p298
      // Predicated region
      $region41: #{_forward_stacked.3} parent=5 // pred_check
        _
      $region42: #{_forward_stacked.3} parent=5 // pred_check_branch
        %301 = sbr.rel (%p298) target = $region44
      $region43: #{_forward_stacked.3} parent=5 // pred_region
        %s302 = ssub.s32 %s16, 1
        %s303 = sand.u32 %s41, 1
        %s304 = scalar_lea.sflag [#allocation5], %s303
        %s305 = sand.u32 %s41, 1
        %s306 = smul.addr %s305, 16
        %s307 = scalar_lea.vmem [#allocation4], %s306
        // Predicated region
        $region45: #{_forward_stacked.3} parent=43 // pred_check
          %p308 = pneg %p54
        $region46: #{_forward_stacked.3} parent=43 // pred_check_branch
          %310 = sbr.rel (%p308) target = $region48
        $region47: #{_forward_stacked.3} parent=43 // pred_region
          %312 = dma.done %s304, 256
        $region48: #{_forward_stacked.3} parent=43 // pred_fallthru
          _
        // Predicated region
        $region49: #{_forward_stacked.3} parent=43 // pred_check
          %p313 = pneg %p157
        $region50: #{_forward_stacked.3} parent=43 // pred_check_branch
          %315 = sbr.rel (%p313) target = $region52
        $region51: #{_forward_stacked.3} parent=43 // pred_region
          %317 = dma.done [#allocation7], 512
        $region52: #{_forward_stacked.3} parent=43 // pred_fallthru
          _
        %s318 = sand.u32 %s41, 1
        %s319 = scalar_lea.sflag [#allocation5], %s318
        %s320 = sand.u32 %s41, 1
        %s321 = smul.addr %s320, 16
        %s322 = scalar_lea.vmem [#allocation4], %s321
        %p323 = pneg %p54
        %p324 = pneg %p51
        %p325 = scmp.lt.s32.totalorder %s25, 1
        %s326 = scalar_select %p325, %s25, 1
        %s327 = scalar_lea.vmem %s1, %s326
        %p328 = pneg %p80
        %p329 = pneg %p77
        %s330 = smul.u32 2, %s26
        %p331 = scmp.lt.s32.totalorder %s25, 1
        %s332 = scalar_select %p331, %s25, 1
        %p333 = scmp.lt.s32.totalorder %s330, 1
        %s334 = scalar_select %p333, %s330, 1
        %s335 = smul.addr %s332, 2
        %s336 = sadd.s32 %s334, %s335
        %s337 = smul.addr %s336, 8
        %s338 = scalar_lea.vmem %s2, %s337
        %p339 = pneg %p108
        %p340 = pneg %p105
        %s341 = smul.u32 2, %s26
        %p342 = scmp.lt.s32.totalorder %s25, 1
        %s343 = scalar_select %p342, %s25, 1
        %p344 = scmp.lt.s32.totalorder %s341, 1
        %s345 = scalar_select %p344, %s341, 1
        %s346 = smul.addr %s343, 2
        %s347 = sadd.s32 %s345, %s346
        %s348 = smul.addr %s347, 2
        %s349 = scalar_lea.vmem %s3, %s348
        %p350 = pneg %p136
        %p351 = pneg %p133
        %p352 = pneg %p157
        %p353 = pneg %p154
        %p354 = pneg %p178
        %p355 = pneg %p175
        %p356 = pneg %p206
        %p357 = pneg %p203
        %s358 = smul.u32 2, %s26
        %p359 = scmp.lt.s32.totalorder %s25, 1
        %s360 = scalar_select %p359, %s25, 1
        %p361 = scmp.lt.s32.totalorder %s358, 1
        %s362 = scalar_select %p361, %s358, 1
        %s363 = smul.addr %s360, 2
        %s364 = sadd.s32 %s362, %s363
        %s365 = smul.addr %s364, 8
        %s366 = scalar_lea.vmem %s6, %s365
        %p367 = scmp.lt.s32.totalorder %s25, 1
        %s368 = scalar_select %p367, %s25, 1
        %s369 = scalar_lea.vmem %s1, %s368
        %s370 = smul.u32 2, %s26
        %p371 = scmp.lt.s32.totalorder %s25, 1
        %s372 = scalar_select %p371, %s25, 1
        %p373 = scmp.lt.s32.totalorder %s370, 1
        %s374 = scalar_select %p373, %s370, 1
        %s375 = smul.addr %s372, 2
        %s376 = sadd.s32 %s374, %s375
        %s377 = smul.addr %s376, 8
        %s378 = scalar_lea.vmem %s2, %s377
        %s379 = smul.u32 2, %s26
        %s380 = smul.u32 2, %s26
        %p381 = scmp.lt.s32.totalorder %s25, 1
        %s382 = scalar_select %p381, %s25, 1
        %p383 = scmp.lt.s32.totalorder %s380, 1
        %s384 = scalar_select %p383, %s380, 1
        %s385 = smul.addr %s382, 2
        %s386 = sadd.s32 %s384, %s385
        %s387 = smul.addr %s386, 2
        %s388 = scalar_lea.vmem %s3, %s387
        %s389 = smul.u32 2, %s26
        %s390 = smul.u32 2, %s26
        %p391 = scmp.lt.s32.totalorder %s25, 1
        %s392 = scalar_select %p391, %s25, 1
        %p393 = scmp.lt.s32.totalorder %s390, 1
        %s394 = scalar_select %p393, %s390, 1
        %s395 = smul.addr %s392, 2
        %s396 = sadd.s32 %s394, %s395
        %s397 = smul.addr %s396, 8
        %s398 = scalar_lea.vmem %s6, %s397
        %s399 = smul.u32 2, %s26
        %p401 = scmp.eq.s32.totalorder %s26, 0
        // Predicated region
        $region53: #{_forward_stacked.3} parent=43 // pred_check
          %p402 = pneg %p401
        $region54: #{_forward_stacked.3} parent=43 // pred_check_branch
          %404 = sbr.rel (%p402) target = $region56
        $region55: #{_forward_stacked.3} parent=43 // pred_region
          %v405 = vld [vmem:[%s307] sm:$0xff]
          %v406 = vld [vmem:[%s307 + $0x8] sm:$0xff]
          %v407 = vld [vmem:[#allocation6] sm:$0xff]
          %v408 = vld [vmem:[#allocation6 + $0x8] sm:$0xff]
          %v409 = vld [vmem:[#allocation6 + $0x10] sm:$0xff]
          %v410 = vld [vmem:[#allocation6 + $0x18] sm:$0xff]
          %vm411 = vcmask 261120
          %v413 = vsel %vm411, %v405, 0
          %v416 = vsel %vm411, %v406, 0
          %418 = vmatpush.msra.mxu0 0.0
          %419 = vmatpush.msra.mxu0 0.0
          %420 = vmatpush.msra.mxu0 0.0
          %421 = vmatpush.msra.mxu0 0.0
          %422 = vmatpush.msra.mxu0 0.0
          %423 = vmatpush.msra.mxu0 0.0
          %424 = vmatpush.msra.mxu0 0.0
          %425 = vmatpush.msra.mxu0 0.0
          %426 = vmatpush.msra.mxu0 0.0
          %427 = vmatpush.msra.mxu0 0.0
          %428 = vmatpush.msra.mxu0 0.0
          %429 = vmatpush.msra.mxu0 0.0
          %430 = vmatpush.msra.mxu0 %v410
          %431 = vmatpush.msra.mxu0 %v409
          %432 = vmatpush.msra.mxu0 %v408
          %433 = vmatpush.msra.mxu0 %v407
          %434 = vmatmul.f32.gmra.mxu0 %v413
          %v435 = vpop.f32.mrf.mxu0
          %v436 = vadd.f32 0.0, %v435
          %437 = vmatmul.f32.gmra.mxu0 %v416
          %v438 = vpop.f32.mrf.mxu0
          %v439 = vadd.f32 0.0, %v438
          %440 = vdwg.mxu0
          %441 = vst.msk [vmem:[#allocation2] sm:$0xff] %vm411, %v436
          %442 = vst.msk [vmem:[#allocation2 + $0x8] sm:$0xff] %vm411, %v439
          %v443 = vld [vmem:[%s5] sm:$0x1]
          %v445 = vsel %vm411, %v443, 0
          %v448 = vsel %vm411, %v436, 0
          %v451 = vsel %vm411, %v439, 0
          %453 = vmatpush.xpose.msra.mxu0 0.0
          %454 = vmatpush.xpose.msra.mxu0 0.0
          %455 = vmatpush.xpose.msra.mxu0 0.0
          %456 = vmatpush.xpose.msra.mxu0 0.0
          %457 = vmatpush.xpose.msra.mxu0 0.0
          %458 = vmatpush.xpose.msra.mxu0 0.0
          %459 = vmatpush.xpose.msra.mxu0 0.0
          %460 = vmatpush.xpose.msra.mxu0 0.0
          %461 = vmatpush.xpose.msra.mxu0 0.0
          %462 = vmatpush.xpose.msra.mxu0 0.0
          %463 = vmatpush.xpose.msra.mxu0 0.0
          %464 = vmatpush.xpose.msra.mxu0 0.0
          %465 = vmatpush.xpose.msra.mxu0 0.0
          %466 = vmatpush.xpose.msra.mxu0 0.0
          %467 = vmatpush.xpose.msra.mxu0 %v451
          %468 = vmatpush.xpose.msra.mxu0 %v448
          %469 = vmatmul.f32.gmra.mxu0 %v445
          %v470 = vpop.f32.mrf.mxu0
          %v471 = vadd.f32 0.0, %v470
          %472 = vdwg.mxu0
          %v473 = vmul.f32 %v471, 0.002
          %vm474 = vcmask 122880
          %475 = vst.msk [vmem:[#allocation3] sm:$0x1] %vm474, %v473
        $region56: #{_forward_stacked.3} parent=43 // pred_fallthru
          _
        %v476 = vld [vmem:[%s369] sm:$0x1]
        %v477 = vld [vmem:[%s378] sm:$0xff]
        %v478 = vld [vmem:[%s378 + $0x8] sm:$0xff]
        %v480 = vperm.slane %v476, 0
        %483 = vset.pattern.permute.xlu0 0
        %484 = vperm.xlu0 %483, %v477
        %v485 = vpop.permute.xlu0 %484
        %488 = vset.pattern.permute.xlu0 0
        %489 = vperm.xlu0 %488, %v478
        %v490 = vpop.permute.xlu0 %489
        %v492 = vsub.f32 %v480, %v485
        %v493 = vsub.f32 %v480, %v490
        %v494 = vand.u32 2147483647, %v492
        %v495 = vand.u32 2147483647, %v493
        %v496 = vsub.f32 0.0, %v494
        %v497 = vsub.f32 0.0, %v495
        %v498 = vld [vmem:[#allocation3] sm:$0x1]
        %v500 = vperm.slane %v498, 0
        %v502 = vmul.f32 %v500, %v496
        %v503 = vmul.f32 %v500, %v497
        %v504 = vmul.f32 %v502, 1.442695
        %v505 = vpow.pop %v504
        %v506 = vmul.f32 %v503, 1.442695
        %v507 = vpow.pop %v506
        %v508 = vld [vmem:[%s388] sm:$0x3]
        %v509 = vld [vmem:[%s388 + $0x2] sm:$0x3]
        %v510 = vunpack.c.0.s8 %v508
        %v511 = vunpack.c.0.s8 %v509
        %vm512 = vcmp.ne.s32.totalorder %v510, 0
        %vm513 = vcmp.ne.s32.totalorder %v511, 0
        %v514 = vsel %vm512, %v505, -1e+30
        %v515 = vsel %vm513, %v507, -1e+30
        %vm516 = vcmask 130048
        %v517 = vsel %vm516, %v514, -inf
        %518 = vmax.xlane.f32.xlu0 %v517
        %v519 = vpop.xlane.xlu0 %518
        %v520 = vsel %vm516, %v515, -inf
        %521 = vmax.xlane.f32.xlu0 %v520
        %v522 = vpop.xlane.xlu0 %521
        %v523 = vsub.f32 %v514, %v519
        %v524 = vsub.f32 %v515, %v522
        %v525 = vmul.f32 %v523, 1.442695
        %v526 = vpow.pop %v525
        %v527 = vmul.f32 %v524, 1.442695
        %v528 = vpow.pop %v527
        %v529 = vsel %vm516, %v526, 0.0
        %530 = vadd.xlane.f32.xlu0 %v529
        %v531 = vpop.xlane.xlu0 %530
        %v532 = vsel %vm516, %v528, 0.0
        %533 = vadd.xlane.f32.xlu0 %v532
        %v534 = vpop.xlane.xlu0 %533
        %v535 = vrcp.pop %v531
        %v536 = vrcp.pop %v534
        %v537 = vmul.f32 %v526, %v535
        %v538 = vmul.f32 %v528, %v536
        %v539 = vpack.c.bf16 %v538, %v537
        %v540 = vld [vmem:[#allocation2] sm:$0xff]
        %v541 = vld [vmem:[#allocation2 + $0x8] sm:$0xff]
        %v542 = vpack.c.bf16 %v541, %v540
        %v544 = vsel %vm516, %v539, 0
        %546 = vmatpush.bf16.msra.mxu0 0
        %547 = vmatpush.bf16.msra.mxu0 0
        %548 = vmatpush.bf16.msra.mxu0 0
        %549 = vmatpush.bf16.msra.mxu0 0
        %550 = vmatpush.bf16.msra.mxu0 0
        %551 = vmatpush.bf16.msra.mxu0 0
        %552 = vmatpush.bf16.msra.mxu0 0
        %553 = vmatpush.bf16.msra.mxu0 %v542
        %554 = vmatmul.bf16.gmra.mxu0 %v544
        %v555 = vpop.f32.mrf.mxu0
        %v556 = vadd.f32 0.0, %v555
        %v557 = vpop.f32.mrf.mxu0
        %v558 = vadd.f32 0.0, %v557
        %559 = vdwg.mxu0
        %vm560 = vcmp.gt.f32.partialorder %v556, 0.0
        %vm561 = vcmp.gt.f32.partialorder %v558, 0.0
        %v562 = vmul.f32 %v556, 1.442695
        %v563 = vpow.pop %v562
        %v564 = vmul.f32 %v558, 1.442695
        %v565 = vpow.pop %v564
        %v566 = vsub.f32 %v563, 1.0
        %v567 = vsub.f32 %v565, 1.0
        %v568 = vsel %vm560, %v556, %v566
        %v569 = vsel %vm561, %v558, %v567
        %vm570 = vcmask 261120
        %571 = vst.msk [vmem:[%s398] sm:$0xff] %vm570, %v568
        %572 = vst.msk [vmem:[%s398 + $0x8] sm:$0xff] %vm570, %v569
        %s573 = smul.u32 2, %s26
        %p574 = scmp.lt.s32.totalorder %s25, 1
        %s575 = scalar_select %p574, %s25, 1
        %p576 = scmp.lt.s32.totalorder %s573, 1
        %s577 = scalar_select %p576, %s573, 1
        %s578 = smul.addr %s575, 2
        %s579 = sadd.s32 %s577, %s578
        %s580 = smul.addr %s579, 8
        %s581 = scalar_lea.vmem %s6, %s580
        // Predicated region
        $region57: #{_forward_stacked.3} parent=43 // pred_check
          %p582 = pneg %p203
        $region58: #{_forward_stacked.3} parent=43 // pred_check_branch
          %584 = sbr.rel (%p582) target = $region60
        $region59: #{_forward_stacked.3} parent=43 // pred_region
          %s585 = smul.u32 2, %s26
        $region60: #{_forward_stacked.3} parent=43 // pred_fallthru
          _
      $region44: #{_forward_stacked.3} parent=5 // pred_fallthru
        _
      %p586 = scmp.le.s32.totalorder 2, %s16
      // Predicated region
      $region61: #{_forward_stacked.3} parent=5 // pred_check
        %p587 = pneg %p586
      $region62: #{_forward_stacked.3} parent=5 // pred_check_branch
        %589 = sbr.rel (%p587) target = $region64
      $region63: #{_forward_stacked.3} parent=5 // pred_region
        %s590 = ssub.s32 %s16, 2
        // Predicated region
        $region65: #{_forward_stacked.3} parent=63 // pred_check
          %p591 = pneg %p209
        $region66: #{_forward_stacked.3} parent=63 // pred_check_branch
          %593 = sbr.rel (%p591) target = $region68
        $region67: #{_forward_stacked.3} parent=63 // pred_region
          %s594 = smul.u32 2, %s28
          %p595 = scmp.lt.s32.totalorder %s27, 1
          %s596 = scalar_select %p595, %s27, 1
          %p597 = scmp.lt.s32.totalorder %s594, 1
          %s598 = scalar_select %p597, %s594, 1
          %s599 = smul.addr %s596, 2
          %s600 = sadd.s32 %s598, %s599
          %s601 = smul.addr %s600, 8
          %s602 = scalar_lea.vmem %s6, %s601
        $region68: #{_forward_stacked.3} parent=63 // pred_fallthru
          _
      $region64: #{_forward_stacked.3} parent=5 // pred_fallthru
        _
    $region6: #{_forward_stacked.3} parent=1 // loop_footer
      %s20 = sadd.s32 1, %s16
    $region7: #{_forward_stacked.3} parent=1 // loop_footer_branch
      %15 = sbr.rel target = $region3
    $region8: #{_forward_stacked.3} parent=1 // loop_exit
      _
    %603 = vsyncpa [#allocation5], 1
    %s604 = scalar_lea.sflag [#allocation5], 1
    %605 = vsyncpa %s604, 1
    %606 = vsyncpa [#allocation7], 1

// kernel: _forward_stacked.5
$region0: #{_forward_stacked.5}
  #allocation0 [shape = 'u32[]', space=smem, size = 0x4, offset = 0x4, fixed_abs, tag = 'smem constant byte address 0x4 - core index']
  #allocation1 [shape = 'u32[72,128]{1,0:T(1,128)}', space=vmem, size = 0x9000, scoped, tag = 'internal scratch']
  %s0 = inlined_call_operand.vmem [shape: f32[2,16,32], index: 0, kind: input, shape index: {}]
  %s1 = inlined_call_operand.vmem [shape: f32[2,32,32], index: 1, kind: input, shape index: {}]
  %s2 = inlined_call_operand.vmem [shape: f32[2,1,32], index: 2, kind: input, shape index: {}]
  %s3 = inlined_call_operand.vmem [shape: f32[2,32,8], index: 3, kind: input, shape index: {}]
  %s4 = inlined_call_operand.vmem [shape: f32[2,1,8], index: 4, kind: input, shape index: {}]
  %s5 = inlined_call_operand.vmem [shape: f32[2,16,8], index: 5, kind: output, shape index: {}]
  %s6 = sld [smem:[#allocation0]]
  $region53: #{_forward_stacked.5} parent=0
    _
  %s8 = ssub.s32 1, %s6
  %s9 = scalar_select 0, %s8, %s6
  loop: start=0, step=1, limit=4
  $region2: #{_forward_stacked.5} parent=0 // loop_pre_header
    _
  $region3: #{_forward_stacked.5} parent=0 // loop_header
    %s11 = sphi 0, %s15
    %p12 = scmp.ge.s32.totalorder %s11, 4
    %s18 = sphi 0, %s30
    %s19 = sphi 0, %s26
    %s20 = sphi 0, %s18
    %s21 = sphi 0, %s19
    %s22 = sphi 0, %s20
    %s23 = sphi 0, %s21
    %s35 = sphi 0, %s37
    %s38 = sphi 0, %s35
    %s39 = sphi 0, %s38
    %s55 = sphi 0, %s39
    %s61 = sphi 0, %s63
    %s64 = sphi 0, %s61
    %s65 = sphi 0, %s64
    %s81 = sphi 0, %s65
    %s87 = sphi 0, %s89
    %s90 = sphi 0, %s87
    %s91 = sphi 0, %s90
    %s107 = sphi 0, %s91
    %s113 = sphi 0, %s115
    %s116 = sphi 0, %s113
    %s117 = sphi 0, %s116
    %s133 = sphi 0, %s117
    %s139 = sphi 0, %s141
    %s142 = sphi 0, %s139
    %s143 = sphi 0, %s142
    %s159 = sphi 0, %s143
    %s167 = sphi 0, %s169
    %s170 = sphi 0, %s167
    %s171 = sphi 0, %s170
    %s187 = sphi 0, %s171
  $region4: #{_forward_stacked.5} parent=0 // loop_header_branch
    %14 = sbr.rel (%p12) target = $region8
  $region5: #{_forward_stacked.5} parent=0 // loop_body
    %s16 = ssub.s32 %s11, 1
    %s17 = ssub.s32 %s11, 2
    %s24 = sadd.s32 1, %s19
    %p25 = scmp.ge.s32.totalorder %s24, 1
    %s26 = scalar_select %p25, 0, %s24
    %s27 = sadd.s32 1, %s18
    %s28 = scalar_select %p25, %s27, %s18
    %p29 = scmp.ge.s32.totalorder %s28, 2
    %s30 = scalar_select %p29, 0, %s28
    %s31 = ssub.s32 %s18, %s30
    %s32 = ssub.s32 %s19, %s26
    %s33 = sor.u32 %s31, %s32
    %p34 = scmp.eq.s32.totalorder %s33, 0
    %s36 = sadd.s32 %s35, 1
    %s37 = scalar_select %p34, %s35, %s36
    %p40 = pneg %p34
    %p41 = scmp.eq.s32.totalorder %s11, 1
    %p42 = por %p40, %p41
    %p43 = scmp.ne.s32.totalorder %s35, %s38
    %p44 = scmp.eq.s32.totalorder %s11, 0
    %p45 = por %p43, %p44
    %p46 = scmp.ne.s32.totalorder %s35, %s38
    %p47 = scmp.eq.s32.totalorder %s16, 1
    %p48 = por %p46, %p47
    %p49 = scmp.ne.s32.totalorder %s38, %s39
    %p50 = scmp.eq.s32.totalorder %s16, 0
    %p51 = por %p49, %p50
    %p52 = scmp.ne.s32.totalorder %s38, %s39
    %p53 = scmp.eq.s32.totalorder %s17, 1
    %p54 = por %p52, %p53
    %p56 = scmp.ne.s32.totalorder %s39, %s55
    %p57 = scmp.eq.s32.totalorder %s17, 0
    %p58 = por %p56, %p57
    %s59 = ssub.s32 %s18, %s30
    %p60 = scmp.eq.s32.totalorder %s59, 0
    %s62 = sadd.s32 %s61, 1
    %s63 = scalar_select %p60, %s61, %s62
    %p66 = pneg %p60
    %p67 = scmp.eq.s32.totalorder %s11, 1
    %p68 = por %p66, %p67
    %p69 = scmp.ne.s32.totalorder %s61, %s64
    %p70 = scmp.eq.s32.totalorder %s11, 0
    %p71 = por %p69, %p70
    %p72 = scmp.ne.s32.totalorder %s61, %s64
    %p73 = scmp.eq.s32.totalorder %s16, 1
    %p74 = por %p72, %p73
    %p75 = scmp.ne.s32.totalorder %s64, %s65
    %p76 = scmp.eq.s32.totalorder %s16, 0
    %p77 = por %p75, %p76
    %p78 = scmp.ne.s32.totalorder %s64, %s65
    %p79 = scmp.eq.s32.totalorder %s17, 1
    %p80 = por %p78, %p79
    %p82 = scmp.ne.s32.totalorder %s65, %s81
    %p83 = scmp.eq.s32.totalorder %s17, 0
    %p84 = por %p82, %p83
    %s85 = ssub.s32 %s18, %s30
    %p86 = scmp.eq.s32.totalorder %s85, 0
    %s88 = sadd.s32 %s87, 1
    %s89 = scalar_select %p86, %s87, %s88
    %p92 = pneg %p86
    %p93 = scmp.eq.s32.totalorder %s11, 1
    %p94 = por %p92, %p93
    %p95 = scmp.ne.s32.totalorder %s87, %s90
    %p96 = scmp.eq.s32.totalorder %s11, 0
    %p97 = por %p95, %p96
    %p98 = scmp.ne.s32.totalorder %s87, %s90
    %p99 = scmp.eq.s32.totalorder %s16, 1
    %p100 = por %p98, %p99
    %p101 = scmp.ne.s32.totalorder %s90, %s91
    %p102 = scmp.eq.s32.totalorder %s16, 0
    %p103 = por %p101, %p102
    %p104 = scmp.ne.s32.totalorder %s90, %s91
    %p105 = scmp.eq.s32.totalorder %s17, 1
    %p106 = por %p104, %p105
    %p108 = scmp.ne.s32.totalorder %s91, %s107
    %p109 = scmp.eq.s32.totalorder %s17, 0
    %p110 = por %p108, %p109
    %s111 = ssub.s32 %s18, %s30
    %p112 = scmp.eq.s32.totalorder %s111, 0
    %s114 = sadd.s32 %s113, 1
    %s115 = scalar_select %p112, %s113, %s114
    %p118 = pneg %p112
    %p119 = scmp.eq.s32.totalorder %s11, 1
    %p120 = por %p118, %p119
    %p121 = scmp.ne.s32.totalorder %s113, %s116
    %p122 = scmp.eq.s32.totalorder %s11, 0
    %p123 = por %p121, %p122
    %p124 = scmp.ne.s32.totalorder %s113, %s116
    %p125 = scmp.eq.s32.totalorder %s16, 1
    %p126 = por %p124, %p125
    %p127 = scmp.ne.s32.totalorder %s116, %s117
    %p128 = scmp.eq.s32.totalorder %s16, 0
    %p129 = por %p127, %p128
    %p130 = scmp.ne.s32.totalorder %s116, %s117
    %p131 = scmp.eq.s32.totalorder %s17, 1
    %p132 = por %p130, %p131
    %p134 = scmp.ne.s32.totalorder %s117, %s133
    %p135 = scmp.eq.s32.totalorder %s17, 0
    %p136 = por %p134, %p135
    %s137 = ssub.s32 %s18, %s30
    %p138 = scmp.eq.s32.totalorder %s137, 0
    %s140 = sadd.s32 %s139, 1
    %s141 = scalar_select %p138, %s139, %s140
    %p144 = pneg %p138
    %p145 = scmp.eq.s32.totalorder %s11, 1
    %p146 = por %p144, %p145
    %p147 = scmp.ne.s32.totalorder %s139, %s142
    %p148 = scmp.eq.s32.totalorder %s11, 0
    %p149 = por %p147, %p148
    %p150 = scmp.ne.s32.totalorder %s139, %s142
    %p151 = scmp.eq.s32.totalorder %s16, 1
    %p152 = por %p150, %p151
    %p153 = scmp.ne.s32.totalorder %s142, %s143
    %p154 = scmp.eq.s32.totalorder %s16, 0
    %p155 = por %p153, %p154
    %p156 = scmp.ne.s32.totalorder %s142, %s143
    %p157 = scmp.eq.s32.totalorder %s17, 1
    %p158 = por %p156, %p157
    %p160 = scmp.ne.s32.totalorder %s143, %s159
    %p161 = scmp.eq.s32.totalorder %s17, 0
    %p162 = por %p160, %p161
    %s163 = ssub.s32 %s18, %s30
    %s164 = ssub.s32 %s19, %s26
    %s165 = sor.u32 %s163, %s164
    %p166 = scmp.eq.s32.totalorder %s165, 0
    %s168 = sadd.s32 %s167, 1
    %s169 = scalar_select %p166, %s167, %s168
    %p172 = pneg %p166
    %p173 = scmp.eq.s32.totalorder %s11, 1
    %p174 = por %p172, %p173
    %p175 = scmp.ne.s32.totalorder %s167, %s170
    %p176 = scmp.eq.s32.totalorder %s11, 0
    %p177 = por %p175, %p176
    %p178 = scmp.ne.s32.totalorder %s167, %s170
    %p179 = scmp.eq.s32.totalorder %s16, 1
    %p180 = por %p178, %p179
    %p181 = scmp.ne.s32.totalorder %s170, %s171
    %p182 = scmp.eq.s32.totalorder %s16, 0
    %p183 = por %p181, %p182
    %p184 = scmp.ne.s32.totalorder %s170, %s171
    %p185 = scmp.eq.s32.totalorder %s17, 1
    %p186 = por %p184, %p185
    %p188 = scmp.ne.s32.totalorder %s171, %s187
    %p189 = scmp.eq.s32.totalorder %s17, 0
    %p190 = por %p188, %p189
    %p191 = scmp.le.s32.totalorder 1, %s11
    %p192 = scmp.lt.s32.totalorder %s11, 3
    %p193 = pnand %p191, %p192
    %p194 = pneg %p193
    // Predicated region
    $region9: #{_forward_stacked.5} parent=5 // pred_check
      _
    $region10: #{_forward_stacked.5} parent=5 // pred_check_branch
      %196 = sbr.rel (%p193) target = $region12
    $region11: #{_forward_stacked.5} parent=5 // pred_region
      %s197 = ssub.s32 %s11, 1
    $region12: #{_forward_stacked.5} parent=5 // pred_fallthru
      _
    %p198 = scmp.lt.s32.totalorder %s11, 2
    // Predicated region
    $region13: #{_forward_stacked.5} parent=5 // pred_check
      %p199 = pneg %p198
    $region14: #{_forward_stacked.5} parent=5 // pred_check_branch
      %201 = sbr.rel (%p199) target = $region16
    $region15: #{_forward_stacked.5} parent=5 // pred_region
      // Predicated region
      $region17: #{_forward_stacked.5} parent=15 // pred_check
        %p202 = pneg %p45
      $region18: #{_forward_stacked.5} parent=15 // pred_check_branch
        %204 = sbr.rel (%p202) target = $region20
      $region19: #{_forward_stacked.5} parent=15 // pred_region
        %s205 = smul.u32 2, %s19
        %p206 = scmp.lt.s32.totalorder %s18, 1
        %s207 = scalar_select %p206, %s18, 1
        %p208 = scmp.lt.s32.totalorder %s205, 1
        %s209 = scalar_select %p208, %s205, 1
        %s210 = smul.addr %s207, 2
        %s211 = sadd.s32 %s209, %s210
        %s212 = smul.addr %s211, 8
        %s213 = scalar_lea.vmem %s0, %s212
        %s214 = smul.u32 2, %s19
      $region20: #{_forward_stacked.5} parent=15 // pred_fallthru
        _
      // Predicated region
      $region21: #{_forward_stacked.5} parent=15 // pred_check
        %p215 = pneg %p71
      $region22: #{_forward_stacked.5} parent=15 // pred_check_branch
        %217 = sbr.rel (%p215) target = $region24
      $region23: #{_forward_stacked.5} parent=15 // pred_region
        %p218 = scmp.lt.s32.totalorder %s18, 1
        %s219 = scalar_select %p218, %s18, 1
        %s220 = smul.addr %s219, 4
        %s221 = smul.addr %s220, 8
        %s222 = scalar_lea.vmem %s1, %s221
      $region24: #{_forward_stacked.5} parent=15 // pred_fallthru
        _
      // Predicated region
      $region25: #{_forward_stacked.5} parent=15 // pred_check
        %p223 = pneg %p97
      $region26: #{_forward_stacked.5} parent=15 // pred_check_branch
        %225 = sbr.rel (%p223) target = $region28
      $region27: #{_forward_stacked.5} parent=15 // pred_region
        %p226 = scmp.lt.s32.totalorder %s18, 1
        %s227 = scalar_select %p226, %s18, 1
        %s228 = scalar_lea.vmem %s2, %s227
      $region28: #{_forward_stacked.5} parent=15 // pred_fallthru
        _
      // Predicated region
      $region29: #{_forward_stacked.5} parent=15 // pred_check
        %p229 = pneg %p123
      $region30: #{_forward_stacked.5} parent=15 // pred_check_branch
        %231 = sbr.rel (%p229) target = $region32
      $region31: #{_forward_stacked.5} parent=15 // pred_region
        %p232 = scmp.lt.s32.totalorder %s18, 1
        %s233 = scalar_select %p232, %s18, 1
        %s234 = smul.addr %s233, 4
        %s235 = smul.addr %s234, 8
        %s236 = scalar_lea.vmem %s3, %s235
      $region32: #{_forward_stacked.5} parent=15 // pred_fallthru
        _
      // Predicated region
      $region33: #{_forward_stacked.5} parent=15 // pred_check
        %p237 = pneg %p149
      $region34: #{_forward_stacked.5} parent=15 // pred_check_branch
        %239 = sbr.rel (%p237) target = $region36
      $region35: #{_forward_stacked.5} parent=15 // pred_region
        %p240 = scmp.lt.s32.totalorder %s18, 1
        %s241 = scalar_select %p240, %s18, 1
        %s242 = scalar_lea.vmem %s4, %s241
      $region36: #{_forward_stacked.5} parent=15 // pred_fallthru
        _
    $region16: #{_forward_stacked.5} parent=5 // pred_fallthru
      _
    %p243 = scmp.le.s32.totalorder 1, %s11
    %p244 = scmp.lt.s32.totalorder %s11, 3
    %p245 = pnand %p243, %p244
    %p246 = pneg %p245
    // Predicated region
    $region37: #{_forward_stacked.5} parent=5 // pred_check
      _
    $region38: #{_forward_stacked.5} parent=5 // pred_check_branch
      %248 = sbr.rel (%p245) target = $region40
    $region39: #{_forward_stacked.5} parent=5 // pred_region
      %s249 = ssub.s32 %s11, 1
      %s250 = smul.u32 2, %s21
      %p251 = scmp.lt.s32.totalorder %s20, 1
      %s252 = scalar_select %p251, %s20, 1
      %p253 = scmp.lt.s32.totalorder %s250, 1
      %s254 = scalar_select %p253, %s250, 1
      %s255 = smul.addr %s252, 2
      %s256 = sadd.s32 %s254, %s255
      %s257 = smul.addr %s256, 8
      %s258 = scalar_lea.vmem %s0, %s257
      %p259 = pneg %p51
      %p260 = pneg %p48
      %p261 = scmp.lt.s32.totalorder %s20, 1
      %s262 = scalar_select %p261, %s20, 1
      %s263 = smul.addr %s262, 4
      %s264 = smul.addr %s263, 8
      %s265 = scalar_lea.vmem %s1, %s264
      %p266 = pneg %p77
      %p267 = pneg %p74
      %p268 = scmp.lt.s32.totalorder %s20, 1
      %s269 = scalar_select %p268, %s20, 1
      %s270 = scalar_lea.vmem %s2, %s269
      %p271 = pneg %p103
      %p272 = pneg %p100
      %p273 = scmp.lt.s32.totalorder %s20, 1
      %s274 = scalar_select %p273, %s20, 1
      %s275 = smul.addr %s274, 4
      %s276 = smul.addr %s275, 8
      %s277 = scalar_lea.vmem %s3, %s276
      %p278 = pneg %p129
      %p279 = pneg %p126
      %p280 = scmp.lt.s32.totalorder %s20, 1
      %s281 = scalar_select %p280, %s20, 1
      %s282 = scalar_lea.vmem %s4, %s281
      %p283 = pneg %p155
      %p284 = pneg %p152
      %p285 = pneg %p183
      %p286 = pneg %p180
      %s287 = smul.u32 2, %s21
      %p288 = scmp.lt.s32.totalorder %s20, 1
      %s289 = scalar_select %p288, %s20, 1
      %p290 = scmp.lt.s32.totalorder %s287, 1
      %s291 = scalar_select %p290, %s287, 1
      %s292 = smul.addr %s289, 2
      %s293 = sadd.s32 %s291, %s292
      %s294 = smul.addr %s293, 8
      %s295 = scalar_lea.vmem %s5, %s294
      %s296 = smul.u32 2, %s21
      %p297 = scmp.lt.s32.totalorder %s20, 1
      %s298 = scalar_select %p297, %s20, 1
      %p299 = scmp.lt.s32.totalorder %s296, 1
      %s300 = scalar_select %p299, %s296, 1
      %s301 = smul.addr %s298, 2
      %s302 = sadd.s32 %s300, %s301
      %s303 = smul.addr %s302, 8
      %s304 = scalar_lea.vmem %s0, %s303
      %s305 = smul.u32 2, %s21
      %p306 = scmp.lt.s32.totalorder %s20, 1
      %s307 = scalar_select %p306, %s20, 1
      %s308 = smul.addr %s307, 4
      %s309 = smul.addr %s308, 8
      %s310 = scalar_lea.vmem %s1, %s309
      %p311 = scmp.lt.s32.totalorder %s20, 1
      %s312 = scalar_select %p311, %s20, 1
      %s313 = scalar_lea.vmem %s2, %s312
      %p314 = scmp.lt.s32.totalorder %s20, 1
      %s315 = scalar_select %p314, %s20, 1
      %s316 = smul.addr %s315, 4
      %s317 = smul.addr %s316, 8
      %s318 = scalar_lea.vmem %s3, %s317
      %p319 = scmp.lt.s32.totalorder %s20, 1
      %s320 = scalar_select %p319, %s20, 1
      %s321 = scalar_lea.vmem %s4, %s320
      %s322 = smul.u32 2, %s21
      %p323 = scmp.lt.s32.totalorder %s20, 1
      %s324 = scalar_select %p323, %s20, 1
      %p325 = scmp.lt.s32.totalorder %s322, 1
      %s326 = scalar_select %p325, %s322, 1
      %s327 = smul.addr %s324, 2
      %s328 = sadd.s32 %s326, %s327
      %s329 = smul.addr %s328, 8
      %s330 = scalar_lea.vmem %s5, %s329
      %s331 = smul.u32 2, %s21
      %v332 = vld [vmem:[%s304] sm:$0xff]
      %v333 = vld [vmem:[%s304 + $0x8] sm:$0xff]
      %v334 = vld [vmem:[%s310] sm:$0xff]
      %v335 = vld [vmem:[%s310 + $0x8] sm:$0xff]
      %v336 = vld [vmem:[%s310 + $0x10] sm:$0xff]
      %v337 = vld [vmem:[%s310 + $0x18] sm:$0xff]
      %v338 = vld [vmem:[%s313] sm:$0x1]
      %v340 = vperm.slane %v338, 0
      %vm342 = vcmask 261120
      %v344 = vsel %vm342, %v332, 0
      %v347 = vsel %vm342, %v333, 0
      %349 = vmatpush.msra.mxu0 0.0
      %350 = vmatpush.msra.mxu0 0.0
      %351 = vmatpush.msra.mxu0 0.0
      %352 = vmatpush.msra.mxu0 0.0
      %353 = vmatpush.msra.mxu0 0.0
      %354 = vmatpush.msra.mxu0 0.0
      %355 = vmatpush.msra.mxu0 0.0
      %356 = vmatpush.msra.mxu0 0.0
      %357 = vmatpush.msra.mxu0 0.0
      %358 = vmatpush.msra.mxu0 0.0
      %359 = vmatpush.msra.mxu0 0.0
      %360 = vmatpush.msra.mxu0 0.0
      %361 = vmatpush.msra.mxu0 %v337
      %362 = vmatpush.msra.mxu0 %v336
      %363 = vmatpush.msra.mxu0 %v335
      %364 = vmatpush.msra.mxu0 %v334
      %365 = vmatmul.f32.gmra.mxu0 %v344
      %v366 = vpop.f32.mrf.mxu0
      %v367 = vadd.f32 %v340, %v366
      %368 = vmatmul.f32.gmra.mxu0 %v347
      %v369 = vpop.f32.mrf.mxu0
      %v370 = vadd.f32 %v340, %v369
      %371 = vdwg.mxu0
      %v372 = vmax.f32 %v367, 0.0
      %v373 = vmax.f32 %v370, 0.0
      %v374 = vld [vmem:[%s318] sm:$0xff]
      %v375 = vld [vmem:[%s318 + $0x8] sm:$0xff]
      %v376 = vld [vmem:[%s318 + $0x10] sm:$0xff]
      %v377 = vld [vmem:[%s318 + $0x18] sm:$0xff]
      %v378 = vld [vmem:[%s321] sm:$0x1]
      %v380 = vperm.slane %v378, 0
      %v383 = vsel %vm342, %v372, 0
      %v386 = vsel %vm342, %v373, 0
      %388 = vmatpush.msra.mxu0 0.0
      %389 = vmatpush.msra.mxu0 0.0
      %390 = vmatpush.msra.mxu0 0.0
      %391 = vmatpush.msra.mxu0 0.0
      %392 = vmatpush.msra.mxu0 0.0
      %393 = vmatpush.msra.mxu0 0.0
      %394 = vmatpush.msra.mxu0 0.0
      %395 = vmatpush.msra.mxu0 0.0
      %396 = vmatpush.msra.mxu0 0.0
      %397 = vmatpush.msra.mxu0 0.0
      %398 = vmatpush.msra.mxu0 0.0
      %399 = vmatpush.msra.mxu0 0.0
      %400 = vmatpush.msra.mxu0 %v377
      %401 = vmatpush.msra.mxu0 %v376
      %402 = vmatpush.msra.mxu0 %v375
      %403 = vmatpush.msra.mxu0 %v374
      %404 = vmatmul.f32.gmra.mxu0 %v383
      %v405 = vpop.f32.mrf.mxu0
      %v406 = vadd.f32 %v380, %v405
      %407 = vmatmul.f32.gmra.mxu0 %v386
      %v408 = vpop.f32.mrf.mxu0
      %v409 = vadd.f32 %v380, %v408
      %410 = vdwg.mxu0
      %vm411 = vcmask 64512
      %412 = vst.msk [vmem:[%s330] sm:$0xff] %vm411, %v406
      %413 = vst.msk [vmem:[%s330 + $0x8] sm:$0xff] %vm411, %v409
      %s414 = smul.u32 2, %s21
      %p415 = scmp.lt.s32.totalorder %s20, 1
      %s416 = scalar_select %p415, %s20, 1
      %p417 = scmp.lt.s32.totalorder %s414, 1
      %s418 = scalar_select %p417, %s414, 1
      %s419 = smul.addr %s416, 2
      %s420 = sadd.s32 %s418, %s419
      %s421 = smul.addr %s420, 8
      %s422 = scalar_lea.vmem %s5, %s421
      // Predicated region
      $region41: #{_forward_stacked.5} parent=39 // pred_check
        %p423 = pneg %p180
      $region42: #{_forward_stacked.5} parent=39 // pred_check_branch
        %425 = sbr.rel (%p423) target = $region44
      $region43: #{_forward_stacked.5} parent=39 // pred_region
        %s426 = smul.u32 2, %s21
      $region44: #{_forward_stacked.5} parent=39 // pred_fallthru
        _
    $region40: #{_forward_stacked.5} parent=5 // pred_fallthru
      _
    %p427 = scmp.le.s32.totalorder 2, %s11
    // Predicated region
    $region45: #{_forward_stacked.5} parent=5 // pred_check
      %p428 = pneg %p427
    $region46: #{_forward_stacked.5} parent=5 // pred_check_branch
      %430 = sbr.rel (%p428) target = $region48
    $region47: #{_forward_stacked.5} parent=5 // pred_region
      %s431 = ssub.s32 %s11, 2
      // Predicated region
      $region49: #{_forward_stacked.5} parent=47 // pred_check
        %p432 = pneg %p186
      $region50: #{_forward_stacked.5} parent=47 // pred_check_branch
        %434 = sbr.rel (%p432) target = $region52
      $region51: #{_forward_stacked.5} parent=47 // pred_region
        %s435 = smul.u32 2, %s23
        %p436 = scmp.lt.s32.totalorder %s22, 1
        %s437 = scalar_select %p436, %s22, 1
        %p438 = scmp.lt.s32.totalorder %s435, 1
        %s439 = scalar_select %p438, %s435, 1
        %s440 = smul.addr %s437, 2
        %s441 = sadd.s32 %s439, %s440
        %s442 = smul.addr %s441, 8
        %s443 = scalar_lea.vmem %s5, %s442
      $region52: #{_forward_stacked.5} parent=47 // pred_fallthru
        _
    $region48: #{_forward_stacked.5} parent=5 // pred_fallthru
      _
  $region6: #{_forward_stacked.5} parent=0 // loop_footer
    %s15 = sadd.s32 1, %s11
  $region7: #{_forward_stacked.5} parent=0 // loop_footer_branch
    %10 = sbr.rel target = $region3
  $region8: #{_forward_stacked.5} parent=0 // loop_exit
    _

</llo_original>
